<compile_context>
chip_gen: v6e
topology: v6e:2x2x1
jax: 0.10.0
libtpu: 0.0.40
codegen_flags: <defaults>
</compile_context>

<pallas_src>
import numpy as np
import jax
import jax.numpy as jnp
from jax.experimental import pallas as pl
from jax.experimental.pallas import tpu as pltpu


# ----------------------------- Pallas kernel -----------------------------

def _t3_kernel(x_ref, w1_ref, b1_ref, w2_ref, b2_ref,
               wf1_ref, wf2_ref, wf3_ref, wf4_ref, out_ref, p1_ref):
    """Fused LeNet forward for one batch block.

    x_ref  : (1, 24, Bt, 256) bf16  im2col'd rows, lane = di*28 + j (140 valid, zero pad)
    w1_ref : (256, 256)       bf16  conv1 banded weights, K-folded over the 5 row taps;
                                    even pooled cols at lanes 0..71, odd at 128..199
    b1_ref : (1, 128)         f32   conv1 bias, lane = c*12 + m
    w2_ref : (5, 128, 128)    bf16  conv2 banded weights per row tap; rows = c*12 + j,
                                    even pooled cols at lanes 0..63, odd at 64..127
    b2_ref : (1, 128)         f32
    wf1_ref: (4, 128, 128)    bf16  fc1 split per pooled row y (PyTorch flatten folded in)
    wf2..4 : (128, 128)       bf16  zero-padded fc weights
    out_ref: (Bt, 128)        f32   logits in lanes 0..9, zeros elsewhere
    p1_ref : (12, Bt, 128)    bf16  scratch: pooled conv1 activations
    """
    Bt = out_ref.shape[0]
    f32 = jnp.float32
    bf16 = jnp.bfloat16

    # ---- conv1: one K-folded MXU matmul (row taps in K, even/odd column banks in N) ----
    a = x_ref[...].reshape(24 * Bt, 256)
    z1 = jnp.dot(a, w1_ref[...], preferred_element_type=f32)        # (24*Bt, 256)
    z1 = z1.reshape(12, 2, Bt, 256)
    z1 = jnp.maximum(z1[:, 0], z1[:, 1])                            # vertical 2x pool
    z1 = jnp.maximum(z1[..., :128], z1[..., 128:])                  # horizontal 2x pool
    # bias/relu after the pools is exact: bias is per-channel, max/relu are monotone.
    p1_ref[...] = jnp.maximum(z1 + b1_ref[...], 0.0).astype(bf16)   # (12, Bt, 128)

    # ---- conv2: 5 row taps on the MXU (first tap peeled), even/odd fused along N ----
    acc = jnp.dot(p1_ref[pl.ds(0, 8)].reshape(8 * Bt, 128), w2_ref[0],
                  preferred_element_type=f32)
    for di in range(1, 5):
        acc = acc + jnp.dot(p1_ref[pl.ds(di, 8)].reshape(8 * Bt, 128), w2_ref[di],
                            preferred_element_type=f32)
    # horizontal 2x pool: even cols in lanes 0..63, odd in 64..127 -> XLU roll + max.
    acc = jnp.maximum(acc, pltpu.roll(acc, 64, 1))
    acc = acc.reshape(4, 2, Bt, 128)
    c2 = jnp.maximum(acc[:, 0], acc[:, 1])                          # vertical 2x pool
    c2 = jnp.maximum(c2 + b2_ref[...], 0.0).astype(bf16)            # (4, Bt, 128)

    # ---- fc stack (PyTorch flatten order folded into wf1; N padded to 128 lanes) ----
    h = jnp.dot(c2[0], wf1_ref[0], preferred_element_type=f32)
    for y in range(1, 4):
        h = h + jnp.dot(c2[y], wf1_ref[y], preferred_element_type=f32)
    h = jnp.maximum(h, 0.0).astype(bf16)
    h = jnp.maximum(jnp.dot(h, wf2_ref[...], preferred_element_type=f32), 0.0).astype(bf16)
    h = jnp.maximum(jnp.dot(h, wf3_ref[...], preferred_element_type=f32), 0.0).astype(bf16)
    out_ref[...] = jnp.dot(h, wf4_ref[...], preferred_element_type=f32)


# ----------------------------- host-side weight prep -----------------------------

def _prep_weights(p):
    hi = jax.lax.Precision.HIGHEST
    bf16 = jnp.bfloat16

    # conv1 banded weights, K-folded: W1cat[di*28 + j, bank + c*12 + m] = W1[c,0,di, j - x]
    # with x = 2m (even bank, lanes 0..71) or 2m+1 (odd bank, lanes 128..199).
    W1r = p["W1"][:, 0]                                    # (6,5,5)  [c, di, dj]
    sel1e = np.zeros((5, 28, 12), np.float32)
    sel1o = np.zeros((5, 28, 12), np.float32)
    for dj in range(5):
        for m in range(12):
            sel1e[dj, 2 * m + dj, m] = 1.0
            sel1o[dj, 2 * m + 1 + dj, m] = 1.0
    S1e = jnp.einsum('cde,ejm->djcm', W1r, sel1e, precision=hi).reshape(140, 72)
    S1o = jnp.einsum('cde,ejm->djcm', W1r, sel1o, precision=hi).reshape(140, 72)
    padn = jnp.zeros((140, 56), jnp.float32)
    W1cat = jnp.concatenate([S1e, padn, S1o, padn], axis=1)          # (140, 256)
    W1cat = jnp.pad(W1cat, ((0, 116), (0, 0))).astype(bf16)          # (256, 256), K padded
    b1v = jnp.pad(jnp.repeat(p["b1"], 12), (0, 56)).reshape(1, 128)

    # conv2 banded weights per tap: T2[di, c*12 + j, bank + o*4 + x'] = W2[o,c,di, j - x]
    # with x = 2x' (even bank, lanes 0..63) or 2x'+1 (odd bank, lanes 64..127).
    sel2e = np.zeros((5, 12, 4), np.float32)
    sel2o = np.zeros((5, 12, 4), np.float32)
    for dj in range(5):
        for x in range(4):
            sel2e[dj, 2 * x + dj, x] = 1.0
            sel2o[dj, 2 * x + 1 + dj, x] = 1.0
    T2e = jnp.einsum('ocde,ejx->dcjox', p["W2"], sel2e, precision=hi).reshape(5, 72, 64)
    T2o = jnp.einsum('ocde,ejx->dcjox', p["W2"], sel2o, precision=hi).reshape(5, 72, 64)
    W2cat = jnp.pad(jnp.concatenate([T2e, T2o], axis=2),
                    ((0, 0), (0, 56), (0, 0))).astype(bf16)          # (5, 128, 128)
    b2v = jnp.tile(jnp.repeat(p["b2"], 4), 2).reshape(1, 128)

    # fc1 split per pooled row y; rows = o*4 + x' (lanes 64..127 zeroed), N padded to 128.
    Wf1 = p["Wf1"].reshape(120, 16, 4, 4)                  # [n, o, y, x]
    Wf1y = jnp.transpose(Wf1, (2, 1, 3, 0)).reshape(4, 64, 120)
    Wf1p = jnp.pad(Wf1y, ((0, 0), (0, 64), (0, 8))).astype(bf16)     # (4, 128, 128)
    Wf2p = jnp.pad(p["Wf2"].T, ((0, 8), (0, 44))).astype(bf16)       # (120,84) -> (128,128)
    Wf3p = jnp.pad(p["Wf3"].T, ((0, 44), (0, 78))).astype(bf16)      # (84,50)  -> (128,128)
    Wf4p = jnp.pad(p["Wf4"].T, ((0, 78), (0, 118))).astype(bf16)     # (50,10)  -> (128,128)
    return W1cat, b1v, W2cat, b2v, Wf1p, Wf2p, Wf3p, Wf4p


# ----------------------------- forward -----------------------------

@jax.jit
def t3_forward(x_nchw, p):
    B = x_nchw.shape[0]
    B8 = ((B + 7) // 8) * 8
    Bt = min(128, B8)                       # batch block per grid step (multiple of 8)
    if B8 > 8 and B8 // Bt < 2:
        Bt = ((B8 // 2 + 7) // 8) * 8       # >=2 grid steps -> both TCs busy on v7x
    nblk = (B8 + Bt - 1) // Bt
    Bp = nblk * Bt

    # Layout glue: NCHW (C=1) -> zero-padded batch -> (h, batch, w) -> im2col over the
    # 5 conv1 row taps (lane = di*28 + j, zero-padded to 256) -> contiguous batch blocks.
    x0 = x_nchw[:, 0].astype(jnp.float32)
    if Bp != B:
        x0 = jnp.pad(x0, ((0, Bp - B), (0, 0), (0, 0)))
    xT = jnp.transpose(x0, (1, 0, 2))                                  # (28, Bp, 28)
    x_i2c = jnp.stack([xT[di:di + 24] for di in range(5)], axis=-2)    # (24, Bp, 5, 28)
    x_i2c = jnp.pad(x_i2c.reshape(24, Bp, 140), ((0, 0), (0, 0), (0, 116)))
    x_g = jnp.transpose(x_i2c.reshape(24, nblk, Bt, 256),
                        (1, 0, 2, 3)).astype(jnp.bfloat16)             # (nblk, 24, Bt, 256)

    ins = _prep_weights(p)

    def _full(shape):
        return pl.BlockSpec(shape, lambda g, n=len(shape): (0,) * n)

    out = pl.pallas_call(
        _t3_kernel,
        out_shape=jax.ShapeDtypeStruct((Bp, 128), jnp.float32),
        grid=(nblk,),
        in_specs=[
            pl.BlockSpec((1, 24, Bt, 256), lambda g: (g, 0, 0, 0)),
            _full((256, 256)), _full((1, 128)),
            _full((5, 128, 128)), _full((1, 128)),
            _full((4, 128, 128)),
            _full((128, 128)), _full((128, 128)), _full((128, 128)),
        ],
        out_specs=pl.BlockSpec((Bt, 128), lambda g: (g, 0)),
        scratch_shapes=[pltpu.VMEM((12, Bt, 128), jnp.bfloat16)],
        compiler_params=pltpu.CompilerParams(
            dimension_semantics=("parallel",),
            vmem_limit_bytes=32 * 1024 * 1024),
    )(x_g, *ins)
    return out[:B, :10]


# ----------------------------- parameters & pure-JAX reference -----------------------------

def init_params(key):
    """Deterministic PyTorch-like uniform(-1/sqrt(fan_in), 1/sqrt(fan_in)) init."""
    ks = jax.random.split(key, 8)

    def unif(k, shape, fan_in):
        bound = 1.0 / float(np.sqrt(fan_in))
        return jax.random.uniform(k, shape, jnp.float32, -bound, bound)

    return {
        "W1": unif(ks[0], (6, 1, 5, 5), 25),
        "b1": unif(ks[1], (6,), 25),
        "W2": unif(ks[2], (16, 6, 5, 5), 150),
        "b2": unif(ks[3], (16,), 150),
        "Wf1": unif(ks[4], (120, 256), 256),
        "Wf2": unif(ks[5], (84, 120), 120),
        "Wf3": unif(ks[6], (50, 84), 84),
        "Wf4": unif(ks[7], (10, 50), 50),
    }


def ref_forward(x, p):
    hi = jax.lax.Precision.HIGHEST

    def pool(y):
        return jax.lax.reduce_window(y, -jnp.inf, jax.lax.max,
                                     (1, 1, 2, 2), (1, 1, 2, 2), "VALID")

    y = jax.lax.conv_general_dilated(x, p["W1"], (1, 1), "VALID",
                                     dimension_numbers=("NCHW", "OIHW", "NCHW"),
                                     precision=hi) + p["b1"][None, :, None, None]
    y = pool(jnp.maximum(y, 0.0))
    y = jax.lax.conv_general_dilated(y, p["W2"], (1, 1), "VALID",
                                     dimension_numbers=("NCHW", "OIHW", "NCHW"),
                                     precision=hi) + p["b2"][None, :, None, None]
    y = pool(jnp.maximum(y, 0.0))
    h = y.reshape(y.shape[0], 16 * 4 * 4)
    h = jnp.maximum(jnp.dot(h, p["Wf1"].T, precision=hi), 0.0)
    h = jnp.maximum(jnp.dot(h, p["Wf2"].T, precision=hi), 0.0)
    h = jnp.maximum(jnp.dot(h, p["Wf3"].T, precision=hi), 0.0)
    return jnp.dot(h, p["Wf4"].T, precision=hi)


# ----------------------------- main -----------------------------

if __name__ == "__main__":
    key = jax.random.PRNGKey(0)
    kx, kp = jax.random.split(key)
    # The module's view(-1, 16*4*4) implies a 28x28 single-channel input.
    x = jax.random.normal(kx, (2, 1, 28, 28), jnp.float32)
    params = init_params(kp)

    out = t3_forward(x, params)
    jax.block_until_ready(out)
    assert out.shape == (2, 10)

    ref = ref_forward(x, params)
    np.testing.assert_allclose(np.asarray(out), np.asarray(ref), rtol=2e-2, atol=2e-2)

    print("KERNEL_OK")
</pallas_src>

<mosaic_0001>
module attributes {stable_mosaic.version = 11 : i64} {
  func.func @_t3_kernel(%arg0: i32, %arg1: memref<1x24x8x256xbf16, #tpu.memory_space<vmem>>, %arg2: memref<256x256xbf16, #tpu.memory_space<vmem>>, %arg3: memref<1x128xf32, #tpu.memory_space<vmem>>, %arg4: memref<5x128x128xbf16, #tpu.memory_space<vmem>>, %arg5: memref<1x128xf32, #tpu.memory_space<vmem>>, %arg6: memref<4x128x128xbf16, #tpu.memory_space<vmem>>, %arg7: memref<128x128xbf16, #tpu.memory_space<vmem>>, %arg8: memref<128x128xbf16, #tpu.memory_space<vmem>>, %arg9: memref<128x128xbf16, #tpu.memory_space<vmem>>, %arg10: memref<8x128xf32, #tpu.memory_space<vmem>>, %arg11: memref<12x8x128xbf16, #tpu.memory_space<vmem>>) attributes {dimension_semantics = [#tpu.dimension_semantics<parallel>], iteration_bounds = array<i64: 1>, scalar_prefetch = 0 : i64, scratch_operands = 1 : i64, tpu.core_type = #tpu.core_type<tc>, window_params = [{transform_indices = @transform_0, window_bounds = array<i64: 1, 24, 8, 256>}, {pipeline_mode = #tpu.pipeline_mode<synchronous>, transform_indices = @transform_1, window_bounds = array<i64: 256, 256>}, {pipeline_mode = #tpu.pipeline_mode<synchronous>, transform_indices = @transform_2, window_bounds = array<i64: 1, 128>}, {pipeline_mode = #tpu.pipeline_mode<synchronous>, transform_indices = @transform_3, window_bounds = array<i64: 5, 128, 128>}, {pipeline_mode = #tpu.pipeline_mode<synchronous>, transform_indices = @transform_4, window_bounds = array<i64: 1, 128>}, {pipeline_mode = #tpu.pipeline_mode<synchronous>, transform_indices = @transform_5, window_bounds = array<i64: 4, 128, 128>}, {pipeline_mode = #tpu.pipeline_mode<synchronous>, transform_indices = @transform_6, window_bounds = array<i64: 128, 128>}, {pipeline_mode = #tpu.pipeline_mode<synchronous>, transform_indices = @transform_7, window_bounds = array<i64: 128, 128>}, {pipeline_mode = #tpu.pipeline_mode<synchronous>, transform_indices = @transform_8, window_bounds = array<i64: 128, 128>}, {transform_indices = @transform_9, window_bounds = array<i64: 8, 128>}]} {
    %c0 = arith.constant 0 : index
    %c0_0 = arith.constant 0 : index
    %c0_1 = arith.constant 0 : index
    %c0_2 = arith.constant 0 : index
    %0 = vector.load %arg1[%c0, %c0_0, %c0_1, %c0_2] : memref<1x24x8x256xbf16, #tpu.memory_space<vmem>>, vector<1x24x8x256xbf16>
    %1 = vector.shape_cast %0 : vector<1x24x8x256xbf16> to vector<192x256xbf16>
    %c0_3 = arith.constant 0 : index
    %c0_4 = arith.constant 0 : index
    %2 = vector.load %arg2[%c0_3, %c0_4] : memref<256x256xbf16, #tpu.memory_space<vmem>>, vector<256x256xbf16>
    %cst = arith.constant dense<0.000000e+00> : vector<192x256xf32>
    %3 = tpu.matmul %1, %2, %cst {dimension_numbers = #tpu.dot_dimension_numbers<[1], [0], [0], [1], [0, 0, 1, 1], [], []>} : vector<192x256xbf16>, vector<256x256xbf16>, vector<192x256xf32> -> vector<192x256xf32>
    %4 = vector.shape_cast %3 : vector<192x256xf32> to vector<12x2x8x256xf32>
    %5 = vector.extract_strided_slice %4 {offsets = [0, 0, 0, 0], sizes = [12, 1, 8, 256], strides = [1, 1, 1, 1]} : vector<12x2x8x256xf32> to vector<12x1x8x256xf32>
    %6 = vector.shape_cast %5 : vector<12x1x8x256xf32> to vector<12x8x256xf32>
    %7 = vector.extract_strided_slice %4 {offsets = [0, 1, 0, 0], sizes = [12, 1, 8, 256], strides = [1, 1, 1, 1]} : vector<12x2x8x256xf32> to vector<12x1x8x256xf32>
    %8 = vector.shape_cast %7 : vector<12x1x8x256xf32> to vector<12x8x256xf32>
    %9 = arith.maximumf %6, %8 : vector<12x8x256xf32>
    %10 = vector.extract_strided_slice %9 {offsets = [0, 0, 0], sizes = [12, 8, 128], strides = [1, 1, 1]} : vector<12x8x256xf32> to vector<12x8x128xf32>
    %11 = vector.extract_strided_slice %9 {offsets = [0, 0, 128], sizes = [12, 8, 128], strides = [1, 1, 1]} : vector<12x8x256xf32> to vector<12x8x128xf32>
    %12 = arith.maximumf %10, %11 : vector<12x8x128xf32>
    %c0_5 = arith.constant 0 : index
    %c0_6 = arith.constant 0 : index
    %13 = vector.load %arg3[%c0_5, %c0_6] : memref<1x128xf32, #tpu.memory_space<vmem>>, vector<1x128xf32>
    %14 = vector.shape_cast %13 : vector<1x128xf32> to vector<1x1x128xf32>
    %15 = vector.broadcast %14 : vector<1x1x128xf32> to vector<12x8x128xf32>
    %16 = arith.addf %12, %15 : vector<12x8x128xf32>
    %cst_7 = arith.constant 0.000000e+00 : f32
    %17 = vector.broadcast %cst_7 : f32 to vector<12x8x128xf32>
    %18 = arith.maximumf %16, %17 : vector<12x8x128xf32>
    %19 = arith.truncf %18 : vector<12x8x128xf32> to vector<12x8x128xbf16>
    %c0_8 = arith.constant 0 : index
    %c0_9 = arith.constant 0 : index
    %c0_10 = arith.constant 0 : index
    %20 = vector.load %arg11[%c0_8, %c0_9, %c0_10] : memref<12x8x128xbf16, #tpu.memory_space<vmem>>, vector<12x8x128xbf16>
    tpu.vector_store %arg11[%c0_8, %c0_9, %c0_10], %19 {strides = array<i32>} : memref<12x8x128xbf16, #tpu.memory_space<vmem>>, vector<12x8x128xbf16>,
    %c0_11 = arith.constant 0 : index
    %c0_12 = arith.constant 0 : index
    %c0_13 = arith.constant 0 : index
    %21 = vector.load %arg11[%c0_11, %c0_12, %c0_13] : memref<12x8x128xbf16, #tpu.memory_space<vmem>>, vector<8x8x128xbf16>
    %22 = vector.shape_cast %21 : vector<8x8x128xbf16> to vector<64x128xbf16>
    %c0_14 = arith.constant 0 : index
    %c0_15 = arith.constant 0 : index
    %c0_16 = arith.constant 0 : index
    %23 = vector.load %arg4[%c0_14, %c0_15, %c0_16] : memref<5x128x128xbf16, #tpu.memory_space<vmem>>, vector<1x128x128xbf16>
    %24 = vector.shape_cast %23 : vector<1x128x128xbf16> to vector<128x128xbf16>
    %cst_17 = arith.constant dense<0.000000e+00> : vector<64x128xf32>
    %25 = tpu.matmul %22, %24, %cst_17 {dimension_numbers = #tpu.dot_dimension_numbers<[1], [0], [0], [1], [0, 0, 1, 1], [], []>} : vector<64x128xbf16>, vector<128x128xbf16>, vector<64x128xf32> -> vector<64x128xf32>
    %c1 = arith.constant 1 : index
    %c0_18 = arith.constant 0 : index
    %c0_19 = arith.constant 0 : index
    %26 = vector.load %arg11[%c1, %c0_18, %c0_19] : memref<12x8x128xbf16, #tpu.memory_space<vmem>>, vector<8x8x128xbf16>
    %27 = vector.shape_cast %26 : vector<8x8x128xbf16> to vector<64x128xbf16>
    %c1_20 = arith.constant 1 : index
    %c0_21 = arith.constant 0 : index
    %c0_22 = arith.constant 0 : index
    %28 = vector.load %arg4[%c1_20, %c0_21, %c0_22] : memref<5x128x128xbf16, #tpu.memory_space<vmem>>, vector<1x128x128xbf16>
    %29 = vector.shape_cast %28 : vector<1x128x128xbf16> to vector<128x128xbf16>
    %cst_23 = arith.constant dense<0.000000e+00> : vector<64x128xf32>
    %30 = tpu.matmul %27, %29, %cst_23 {dimension_numbers = #tpu.dot_dimension_numbers<[1], [0], [0], [1], [0, 0, 1, 1], [], []>} : vector<64x128xbf16>, vector<128x128xbf16>, vector<64x128xf32> -> vector<64x128xf32>
    %31 = arith.addf %25, %30 : vector<64x128xf32>
    %c2 = arith.constant 2 : index
    %c0_24 = arith.constant 0 : index
    %c0_25 = arith.constant 0 : index
    %32 = vector.load %arg11[%c2, %c0_24, %c0_25] : memref<12x8x128xbf16, #tpu.memory_space<vmem>>, vector<8x8x128xbf16>
    %33 = vector.shape_cast %32 : vector<8x8x128xbf16> to vector<64x128xbf16>
    %c2_26 = arith.constant 2 : index
    %c0_27 = arith.constant 0 : index
    %c0_28 = arith.constant 0 : index
    %34 = vector.load %arg4[%c2_26, %c0_27, %c0_28] : memref<5x128x128xbf16, #tpu.memory_space<vmem>>, vector<1x128x128xbf16>
    %35 = vector.shape_cast %34 : vector<1x128x128xbf16> to vector<128x128xbf16>
    %cst_29 = arith.constant dense<0.000000e+00> : vector<64x128xf32>
    %36 = tpu.matmul %33, %35, %cst_29 {dimension_numbers = #tpu.dot_dimension_numbers<[1], [0], [0], [1], [0, 0, 1, 1], [], []>} : vector<64x128xbf16>, vector<128x128xbf16>, vector<64x128xf32> -> vector<64x128xf32>
    %37 = arith.addf %31, %36 : vector<64x128xf32>
    %c3 = arith.constant 3 : index
    %c0_30 = arith.constant 0 : index
    %c0_31 = arith.constant 0 : index
    %38 = vector.load %arg11[%c3, %c0_30, %c0_31] : memref<12x8x128xbf16, #tpu.memory_space<vmem>>, vector<8x8x128xbf16>
    %39 = vector.shape_cast %38 : vector<8x8x128xbf16> to vector<64x128xbf16>
    %c3_32 = arith.constant 3 : index
    %c0_33 = arith.constant 0 : index
    %c0_34 = arith.constant 0 : index
    %40 = vector.load %arg4[%c3_32, %c0_33, %c0_34] : memref<5x128x128xbf16, #tpu.memory_space<vmem>>, vector<1x128x128xbf16>
    %41 = vector.shape_cast %40 : vector<1x128x128xbf16> to vector<128x128xbf16>
    %cst_35 = arith.constant dense<0.000000e+00> : vector<64x128xf32>
    %42 = tpu.matmul %39, %41, %cst_35 {dimension_numbers = #tpu.dot_dimension_numbers<[1], [0], [0], [1], [0, 0, 1, 1], [], []>} : vector<64x128xbf16>, vector<128x128xbf16>, vector<64x128xf32> -> vector<64x128xf32>
    %43 = arith.addf %37, %42 : vector<64x128xf32>
    %c4 = arith.constant 4 : index
    %c0_36 = arith.constant 0 : index
    %c0_37 = arith.constant 0 : index
    %44 = vector.load %arg11[%c4, %c0_36, %c0_37] : memref<12x8x128xbf16, #tpu.memory_space<vmem>>, vector<8x8x128xbf16>
    %45 = vector.shape_cast %44 : vector<8x8x128xbf16> to vector<64x128xbf16>
    %c4_38 = arith.constant 4 : index
    %c0_39 = arith.constant 0 : index
    %c0_40 = arith.constant 0 : index
    %46 = vector.load %arg4[%c4_38, %c0_39, %c0_40] : memref<5x128x128xbf16, #tpu.memory_space<vmem>>, vector<1x128x128xbf16>
    %47 = vector.shape_cast %46 : vector<1x128x128xbf16> to vector<128x128xbf16>
    %cst_41 = arith.constant dense<0.000000e+00> : vector<64x128xf32>
    %48 = tpu.matmul %45, %47, %cst_41 {dimension_numbers = #tpu.dot_dimension_numbers<[1], [0], [0], [1], [0, 0, 1, 1], [], []>} : vector<64x128xbf16>, vector<128x128xbf16>, vector<64x128xf32> -> vector<64x128xf32>
    %49 = arith.addf %43, %48 : vector<64x128xf32>
    %c64_i32 = arith.constant 64 : i32
    %50 = tpu.dynamic_rotate %49 by %c64_i32 dim 1 : vector<64x128xf32>, i32 -> vector<64x128xf32>
    %51 = arith.maximumf %49, %50 : vector<64x128xf32>
    %52 = vector.shape_cast %51 : vector<64x128xf32> to vector<4x2x8x128xf32>
    %53 = vector.extract_strided_slice %52 {offsets = [0, 0, 0, 0], sizes = [4, 1, 8, 128], strides = [1, 1, 1, 1]} : vector<4x2x8x128xf32> to vector<4x1x8x128xf32>
    %54 = vector.shape_cast %53 : vector<4x1x8x128xf32> to vector<4x8x128xf32>
    %55 = vector.extract_strided_slice %52 {offsets = [0, 1, 0, 0], sizes = [4, 1, 8, 128], strides = [1, 1, 1, 1]} : vector<4x2x8x128xf32> to vector<4x1x8x128xf32>
    %56 = vector.shape_cast %55 : vector<4x1x8x128xf32> to vector<4x8x128xf32>
    %57 = arith.maximumf %54, %56 : vector<4x8x128xf32>
    %c0_42 = arith.constant 0 : index
    %c0_43 = arith.constant 0 : index
    %58 = vector.load %arg5[%c0_42, %c0_43] : memref<1x128xf32, #tpu.memory_space<vmem>>, vector<1x128xf32>
    %59 = vector.shape_cast %58 : vector<1x128xf32> to vector<1x1x128xf32>
    %60 = vector.broadcast %59 : vector<1x1x128xf32> to vector<4x8x128xf32>
    %61 = arith.addf %57, %60 : vector<4x8x128xf32>
    %cst_44 = arith.constant 0.000000e+00 : f32
    %62 = vector.broadcast %cst_44 : f32 to vector<4x8x128xf32>
    %63 = arith.maximumf %61, %62 : vector<4x8x128xf32>
    %64 = arith.truncf %63 : vector<4x8x128xf32> to vector<4x8x128xbf16>
    %65 = vector.extract_strided_slice %64 {offsets = [0, 0, 0], sizes = [1, 8, 128], strides = [1, 1, 1]} : vector<4x8x128xbf16> to vector<1x8x128xbf16>
    %66 = vector.shape_cast %65 : vector<1x8x128xbf16> to vector<8x128xbf16>
    %c0_45 = arith.constant 0 : index
    %c0_46 = arith.constant 0 : index
    %c0_47 = arith.constant 0 : index
    %67 = vector.load %arg6[%c0_45, %c0_46, %c0_47] : memref<4x128x128xbf16, #tpu.memory_space<vmem>>, vector<1x128x128xbf16>
    %68 = vector.shape_cast %67 : vector<1x128x128xbf16> to vector<128x128xbf16>
    %cst_48 = arith.constant dense<0.000000e+00> : vector<8x128xf32>
    %69 = tpu.matmul %66, %68, %cst_48 {dimension_numbers = #tpu.dot_dimension_numbers<[1], [0], [0], [1], [0, 0, 1, 1], [], []>} : vector<8x128xbf16>, vector<128x128xbf16>, vector<8x128xf32> -> vector<8x128xf32>
    %70 = vector.extract_strided_slice %64 {offsets = [1, 0, 0], sizes = [1, 8, 128], strides = [1, 1, 1]} : vector<4x8x128xbf16> to vector<1x8x128xbf16>
    %71 = vector.shape_cast %70 : vector<1x8x128xbf16> to vector<8x128xbf16>
    %c1_49 = arith.constant 1 : index
    %c0_50 = arith.constant 0 : index
    %c0_51 = arith.constant 0 : index
    %72 = vector.load %arg6[%c1_49, %c0_50, %c0_51] : memref<4x128x128xbf16, #tpu.memory_space<vmem>>, vector<1x128x128xbf16>
    %73 = vector.shape_cast %72 : vector<1x128x128xbf16> to vector<128x128xbf16>
    %cst_52 = arith.constant dense<0.000000e+00> : vector<8x128xf32>
    %74 = tpu.matmul %71, %73, %cst_52 {dimension_numbers = #tpu.dot_dimension_numbers<[1], [0], [0], [1], [0, 0, 1, 1], [], []>} : vector<8x128xbf16>, vector<128x128xbf16>, vector<8x128xf32> -> vector<8x128xf32>
    %75 = arith.addf %69, %74 : vector<8x128xf32>
    %76 = vector.extract_strided_slice %64 {offsets = [2, 0, 0], sizes = [1, 8, 128], strides = [1, 1, 1]} : vector<4x8x128xbf16> to vector<1x8x128xbf16>
    %77 = vector.shape_cast %76 : vector<1x8x128xbf16> to vector<8x128xbf16>
    %c2_53 = arith.constant 2 : index
    %c0_54 = arith.constant 0 : index
    %c0_55 = arith.constant 0 : index
    %78 = vector.load %arg6[%c2_53, %c0_54, %c0_55] : memref<4x128x128xbf16, #tpu.memory_space<vmem>>, vector<1x128x128xbf16>
    %79 = vector.shape_cast %78 : vector<1x128x128xbf16> to vector<128x128xbf16>
    %cst_56 = arith.constant dense<0.000000e+00> : vector<8x128xf32>
    %80 = tpu.matmul %77, %79, %cst_56 {dimension_numbers = #tpu.dot_dimension_numbers<[1], [0], [0], [1], [0, 0, 1, 1], [], []>} : vector<8x128xbf16>, vector<128x128xbf16>, vector<8x128xf32> -> vector<8x128xf32>
    %81 = arith.addf %75, %80 : vector<8x128xf32>
    %82 = vector.extract_strided_slice %64 {offsets = [3, 0, 0], sizes = [1, 8, 128], strides = [1, 1, 1]} : vector<4x8x128xbf16> to vector<1x8x128xbf16>
    %83 = vector.shape_cast %82 : vector<1x8x128xbf16> to vector<8x128xbf16>
    %c3_57 = arith.constant 3 : index
    %c0_58 = arith.constant 0 : index
    %c0_59 = arith.constant 0 : index
    %84 = vector.load %arg6[%c3_57, %c0_58, %c0_59] : memref<4x128x128xbf16, #tpu.memory_space<vmem>>, vector<1x128x128xbf16>
    %85 = vector.shape_cast %84 : vector<1x128x128xbf16> to vector<128x128xbf16>
    %cst_60 = arith.constant dense<0.000000e+00> : vector<8x128xf32>
    %86 = tpu.matmul %83, %85, %cst_60 {dimension_numbers = #tpu.dot_dimension_numbers<[1], [0], [0], [1], [0, 0, 1, 1], [], []>} : vector<8x128xbf16>, vector<128x128xbf16>, vector<8x128xf32> -> vector<8x128xf32>
    %87 = arith.addf %81, %86 : vector<8x128xf32>
    %cst_61 = arith.constant 0.000000e+00 : f32
    %88 = vector.broadcast %cst_61 : f32 to vector<8x128xf32>
    %89 = arith.maximumf %87, %88 : vector<8x128xf32>
    %90 = arith.truncf %89 : vector<8x128xf32> to vector<8x128xbf16>
    %c0_62 = arith.constant 0 : index
    %c0_63 = arith.constant 0 : index
    %91 = vector.load %arg7[%c0_62, %c0_63] : memref<128x128xbf16, #tpu.memory_space<vmem>>, vector<128x128xbf16>
    %cst_64 = arith.constant dense<0.000000e+00> : vector<8x128xf32>
    %92 = tpu.matmul %90, %91, %cst_64 {dimension_numbers = #tpu.dot_dimension_numbers<[1], [0], [0], [1], [0, 0, 1, 1], [], []>} : vector<8x128xbf16>, vector<128x128xbf16>, vector<8x128xf32> -> vector<8x128xf32>
    %cst_65 = arith.constant 0.000000e+00 : f32
    %93 = vector.broadcast %cst_65 : f32 to vector<8x128xf32>
    %94 = arith.maximumf %92, %93 : vector<8x128xf32>
    %95 = arith.truncf %94 : vector<8x128xf32> to vector<8x128xbf16>
    %c0_66 = arith.constant 0 : index
    %c0_67 = arith.constant 0 : index
    %96 = vector.load %arg8[%c0_66, %c0_67] : memref<128x128xbf16, #tpu.memory_space<vmem>>, vector<128x128xbf16>
    %cst_68 = arith.constant dense<0.000000e+00> : vector<8x128xf32>
    %97 = tpu.matmul %95, %96, %cst_68 {dimension_numbers = #tpu.dot_dimension_numbers<[1], [0], [0], [1], [0, 0, 1, 1], [], []>} : vector<8x128xbf16>, vector<128x128xbf16>, vector<8x128xf32> -> vector<8x128xf32>
    %cst_69 = arith.constant 0.000000e+00 : f32
    %98 = vector.broadcast %cst_69 : f32 to vector<8x128xf32>
    %99 = arith.maximumf %97, %98 : vector<8x128xf32>
    %100 = arith.truncf %99 : vector<8x128xf32> to vector<8x128xbf16>
    %c0_70 = arith.constant 0 : index
    %c0_71 = arith.constant 0 : index
    %101 = vector.load %arg9[%c0_70, %c0_71] : memref<128x128xbf16, #tpu.memory_space<vmem>>, vector<128x128xbf16>
    %cst_72 = arith.constant dense<0.000000e+00> : vector<8x128xf32>
    %102 = tpu.matmul %100, %101, %cst_72 {dimension_numbers = #tpu.dot_dimension_numbers<[1], [0], [0], [1], [0, 0, 1, 1], [], []>} : vector<8x128xbf16>, vector<128x128xbf16>, vector<8x128xf32> -> vector<8x128xf32>
    %c0_73 = arith.constant 0 : index
    %c0_74 = arith.constant 0 : index
    %103 = vector.load %arg10[%c0_73, %c0_74] : memref<8x128xf32, #tpu.memory_space<vmem>>, vector<8x128xf32>
    tpu.vector_store %arg10[%c0_73, %c0_74], %102 {strides = array<i32>} : memref<8x128xf32, #tpu.memory_space<vmem>>, vector<8x128xf32>,
    return
  }
  func.func @transform_0(%arg0: i32) -> (i32, i32, i32, i32) {
    %c0_i32 = arith.constant 0 : i32
    %c0_i32_0 = arith.constant 0 : i32
    %c0_i32_1 = arith.constant 0 : i32
    %c0_i32_2 = arith.constant 0 : i32
    return %arg0, %c0_i32, %c0_i32_0, %c0_i32_1 : i32, i32, i32, i32
  }
  func.func @transform_1(%arg0: i32) -> (i32, i32) {
    %c0_i32 = arith.constant 0 : i32
    %c0_i32_0 = arith.constant 0 : i32
    %c0_i32_1 = arith.constant 0 : i32
    return %c0_i32, %c0_i32_0 : i32, i32
  }
  func.func @transform_2(%arg0: i32) -> (i32, i32) {
    %c0_i32 = arith.constant 0 : i32
    %c0_i32_0 = arith.constant 0 : i32
    %c0_i32_1 = arith.constant 0 : i32
    return %c0_i32, %c0_i32_0 : i32, i32
  }
  func.func @transform_3(%arg0: i32) -> (i32, i32, i32) {
    %c0_i32 = arith.constant 0 : i32
    %c0_i32_0 = arith.constant 0 : i32
    %c0_i32_1 = arith.constant 0 : i32
    %c0_i32_2 = arith.constant 0 : i32
    return %c0_i32, %c0_i32_0, %c0_i32_1 : i32, i32, i32
  }
  func.func @transform_4(%arg0: i32) -> (i32, i32) {
    %c0_i32 = arith.constant 0 : i32
    %c0_i32_0 = arith.constant 0 : i32
    %c0_i32_1 = arith.constant 0 : i32
    return %c0_i32, %c0_i32_0 : i32, i32
  }
  func.func @transform_5(%arg0: i32) -> (i32, i32, i32) {
    %c0_i32 = arith.constant 0 : i32
    %c0_i32_0 = arith.constant 0 : i32
    %c0_i32_1 = arith.constant 0 : i32
    %c0_i32_2 = arith.constant 0 : i32
    return %c0_i32, %c0_i32_0, %c0_i32_1 : i32, i32, i32
  }
  func.func @transform_6(%arg0: i32) -> (i32, i32) {
    %c0_i32 = arith.constant 0 : i32
    %c0_i32_0 = arith.constant 0 : i32
    %c0_i32_1 = arith.constant 0 : i32
    return %c0_i32, %c0_i32_0 : i32, i32
  }
  func.func @transform_7(%arg0: i32) -> (i32, i32) {
    %c0_i32 = arith.constant 0 : i32
    %c0_i32_0 = arith.constant 0 : i32
    %c0_i32_1 = arith.constant 0 : i32
    return %c0_i32, %c0_i32_0 : i32, i32
  }
  func.func @transform_8(%arg0: i32) -> (i32, i32) {
    %c0_i32 = arith.constant 0 : i32
    %c0_i32_0 = arith.constant 0 : i32
    %c0_i32_1 = arith.constant 0 : i32
    return %c0_i32, %c0_i32_0 : i32, i32
  }
  func.func @transform_9(%arg0: i32) -> (i32, i32) {
    %c0_i32 = arith.constant 0 : i32
    %c0_i32_0 = arith.constant 0 : i32
    return %arg0, %c0_i32 : i32, i32
  }
}

</mosaic_0001>

<llo_original>
// kernel: tile.5
$region0: #{tile.5}
  %s0 = inlined_call_operand.vmem [shape: f32[16,4], index: 0, kind: input, shape index: {}]
  %s1 = inlined_call_operand.vmem [shape: f32[64], index: 1, kind: output, shape index: {}]
  $region1: #{tile.5} parent=0
    #allocation0 [shape = 'u8[4096]{0}', space=vmem, size = 0x1000, scoped, tag = 'scoped mem for output reshape']
    %v2 = vld [vmem:[%s0] sm:$0x1]
    %vm3 = vcmask 31744
    %4 = vst.msk [vmem:[#allocation0] sm:$0x1] %vm3, %v2
    %s5 = scalar_lea.vmem %s0, 15
    %v6 = vld [vmem:[%s5] sm:$0x1]
    %7 = vrot.lane.b32.xlu0 %v6, 60
    %v8 = vpop.permute.xlu0 %7
    %vm9 = vcmask 523744
    %10 = vst.msk [vmem:[#allocation0] sm:$0x1] %vm9, %v8
    %s11 = scalar_lea.vmem %s0, 14
    %v12 = vld [vmem:[%s11] sm:$0x1]
    %13 = vrot.lane.b32.xlu0 %v12, 56
    %v14 = vpop.permute.xlu0 %13
    %vm15 = vcmask 490944
    %16 = vst.msk [vmem:[#allocation0] sm:$0x1] %vm15, %v14
    %s17 = scalar_lea.vmem %s0, 13
    %v18 = vld [vmem:[%s17] sm:$0x1]
    %19 = vrot.lane.b32.xlu0 %v18, 52
    %v20 = vpop.permute.xlu0 %19
    %vm21 = vcmask 458144
    %22 = vst.msk [vmem:[#allocation0] sm:$0x1] %vm21, %v20
    %s23 = scalar_lea.vmem %s0, 12
    %v24 = vld [vmem:[%s23] sm:$0x1]
    %25 = vrot.lane.b32.xlu0 %v24, 48
    %v26 = vpop.permute.xlu0 %25
    %vm27 = vcmask 425344
    %28 = vst.msk [vmem:[#allocation0] sm:$0x1] %vm27, %v26
    %s29 = scalar_lea.vmem %s0, 11
    %v30 = vld [vmem:[%s29] sm:$0x1]
    %31 = vrot.lane.b32.xlu0 %v30, 44
    %v32 = vpop.permute.xlu0 %31
    %vm33 = vcmask 392544
    %34 = vst.msk [vmem:[#allocation0] sm:$0x1] %vm33, %v32
    %s35 = scalar_lea.vmem %s0, 10
    %v36 = vld [vmem:[%s35] sm:$0x1]
    %37 = vrot.lane.b32.xlu0 %v36, 40
    %v38 = vpop.permute.xlu0 %37
    %vm39 = vcmask 359744
    %40 = vst.msk [vmem:[#allocation0] sm:$0x1] %vm39, %v38
    %s41 = scalar_lea.vmem %s0, 9
    %v42 = vld [vmem:[%s41] sm:$0x1]
    %43 = vrot.lane.b32.xlu0 %v42, 36
    %v44 = vpop.permute.xlu0 %43
    %vm45 = vcmask 326944
    %46 = vst.msk [vmem:[#allocation0] sm:$0x1] %vm45, %v44
    %s47 = scalar_lea.vmem %s0, 8
    %v48 = vld [vmem:[%s47] sm:$0x1]
    %49 = vrot.lane.b32.xlu0 %v48, 32
    %v50 = vpop.permute.xlu0 %49
    %vm51 = vcmask 294144
    %52 = vst.msk [vmem:[#allocation0] sm:$0x1] %vm51, %v50
    %s53 = scalar_lea.vmem %s0, 7
    %v54 = vld [vmem:[%s53] sm:$0x1]
    %55 = vrot.lane.b32.xlu0 %v54, 28
    %v56 = vpop.permute.xlu0 %55
    %vm57 = vcmask 261344
    %58 = vst.msk [vmem:[#allocation0] sm:$0x1] %vm57, %v56
    %s59 = scalar_lea.vmem %s0, 6
    %v60 = vld [vmem:[%s59] sm:$0x1]
    %61 = vrot.lane.b32.xlu0 %v60, 24
    %v62 = vpop.permute.xlu0 %61
    %vm63 = vcmask 228544
    %64 = vst.msk [vmem:[#allocation0] sm:$0x1] %vm63, %v62
    %s65 = scalar_lea.vmem %s0, 5
    %v66 = vld [vmem:[%s65] sm:$0x1]
    %67 = vrot.lane.b32.xlu0 %v66, 20
    %v68 = vpop.permute.xlu0 %67
    %vm69 = vcmask 195744
    %70 = vst.msk [vmem:[#allocation0] sm:$0x1] %vm69, %v68
    %s71 = scalar_lea.vmem %s0, 4
    %v72 = vld [vmem:[%s71] sm:$0x1]
    %73 = vrot.lane.b32.xlu0 %v72, 16
    %v74 = vpop.permute.xlu0 %73
    %vm75 = vcmask 162944
    %76 = vst.msk [vmem:[#allocation0] sm:$0x1] %vm75, %v74
    %s77 = scalar_lea.vmem %s0, 3
    %v78 = vld [vmem:[%s77] sm:$0x1]
    %79 = vrot.lane.b32.xlu0 %v78, 12
    %v80 = vpop.permute.xlu0 %79
    %vm81 = vcmask 130144
    %82 = vst.msk [vmem:[#allocation0] sm:$0x1] %vm81, %v80
    %s83 = scalar_lea.vmem %s0, 2
    %v84 = vld [vmem:[%s83] sm:$0x1]
    %85 = vrot.lane.b32.xlu0 %v84, 8
    %v86 = vpop.permute.xlu0 %85
    %vm87 = vcmask 97344
    %88 = vst.msk [vmem:[#allocation0] sm:$0x1] %vm87, %v86
    %s89 = scalar_lea.vmem %s0, 1
    %v90 = vld [vmem:[%s89] sm:$0x1]
    %91 = vrot.lane.b32.xlu0 %v90, 4
    %v92 = vpop.permute.xlu0 %91
    %vm93 = vcmask 64544
    %94 = vst.msk [vmem:[#allocation0] sm:$0x1] %vm93, %v92
    %s96 = sshll.u32 1, 1
    %s97 = ssub.s32 %s96, 1
    %v99 = vld [vmem:[#allocation0] sm:%s97]
    %s100 = sshll.u32 1, 1
    %s101 = ssub.s32 %s100, 1
    %102 = vst [vmem:[%s1] sm:%s101] %v99

// kernel: tile.6
$region0: #{tile.6}
  #allocation0 [shape = 's32[1]{0}', space=sflag, size = 0x4, scoped, tag = 'scoped memory for tile.6']
  %s0 = inlined_call_operand.vmem [shape: f32[64], index: 0, kind: input, shape index: {}]
  %s1 = inlined_call_operand.vmem [shape: f32[2,64], index: 1, kind: output, shape index: {}]
  // Predicated region
  $region2: #{tile.6} parent=0 // pred_check
    _
  $region3: #{tile.6} parent=0 // pred_check_branch
    %3 = sbr.rel (0) target = $region5
  $region4: #{tile.6} parent=0 // pred_region
    _
  $region5: #{tile.6} parent=0 // pred_fallthru
    _
  %v4 = vld [vmem:[%s0] ss:$0 sm:$0xff]
  %5 = vst [vmem:[%s1] sm:$0x3] %v4

// kernel: tile.7
$region0: #{tile.7}
  %s0 = inlined_call_operand.vmem [shape: f32[2,64], index: 0, kind: input, shape index: {}]
  %s1 = inlined_call_operand.vmem [shape: f32[1,128], index: 1, kind: output, shape index: {}]
  $region1: #{tile.7} parent=0
    #allocation0 [shape = 'u8[4096]{0}', space=vmem, size = 0x1000, scoped, tag = 'scoped mem for output reshape']
    #allocation1 [shape = 'u8[4096]{0}', space=vmem, size = 0x1000, scoped, tag = 'scoped mem for input reshape']
    %s3 = sshll.u32 1, 2
    %s4 = ssub.s32 %s3, 1
    %v5 = vld [vmem:[%s0] sm:%s4]
    %6 = vst [vmem:[#allocation1] sm:%s4] %v5
    %v7 = vld [vmem:[#allocation1] sm:$0x1]
    %vm8 = vcmask 523264
    %9 = vst.msk [vmem:[#allocation0] sm:$0x1] %vm8, %v7
    %s10 = scalar_lea.vmem [#allocation1], 1
    %v11 = vld [vmem:[%s10] sm:$0x1]
    %12 = vrot.lane.b32.xlu0 %v11, 64
    %v13 = vpop.permute.xlu0 %12
    %vm14 = vcmask 1048064
    %15 = vst.msk [vmem:[#allocation0] sm:$0x1] %vm14, %v13
    %s17 = sshll.u32 1, 1
    %s18 = ssub.s32 %s17, 1
    %v20 = vld [vmem:[#allocation0] sm:%s18]
    %s21 = sshll.u32 1, 1
    %s22 = ssub.s32 %s21, 1
    %23 = vst [vmem:[%s1] sm:%s22] %v20

// kernel: t3_forward.1
$region0: #{t3_forward.1}
  #allocation0 [shape = 'u32[]', space=smem, size = 0x4, offset = 0x4, fixed_abs, tag = 'smem constant byte address 0x4 - core index']
  #allocation1 [shape = 'u32[144,128]{1,0:T(1,128)}', space=vmem, size = 0x12000, scoped, tag = 'internal scratch']
  #allocation2 [shape = 'bf16[12,8,128]{2,1,0:T(8,128)(2,1)}', space=vmem, size = 0x6000, scoped, tag = 'scratch operand']
  %s0 = inlined_call_operand.vmem [shape: bf16[1,24,8,256], index: 0, kind: input, shape index: {}]
  %s1 = inlined_call_operand.vmem [shape: bf16[256,256], index: 1, kind: input, shape index: {}]
  %s2 = inlined_call_operand.vmem [shape: f32[1,128], index: 2, kind: input, shape index: {}]
  %s3 = inlined_call_operand.vmem [shape: bf16[5,128,128], index: 3, kind: input, shape index: {}]
  %s4 = inlined_call_operand.vmem [shape: f32[1,128], index: 4, kind: input, shape index: {}]
  %s5 = inlined_call_operand.vmem [shape: bf16[4,128,128], index: 5, kind: input, shape index: {}]
  %s6 = inlined_call_operand.vmem [shape: bf16[128,128], index: 6, kind: input, shape index: {}]
  %s7 = inlined_call_operand.vmem [shape: bf16[128,128], index: 7, kind: input, shape index: {}]
  %s8 = inlined_call_operand.vmem [shape: bf16[128,128], index: 8, kind: input, shape index: {}]
  %s9 = inlined_call_operand.vmem [shape: f32[8,128], index: 9, kind: output, shape index: {}]
  %s10 = sld [smem:[#allocation0]]
  $region46: #{t3_forward.1} parent=0
    _
  %s12 = ssub.s32 1, %s10
  %s13 = scalar_select 0, %s12, %s10
  // Predicated region
  $region2: #{t3_forward.1} parent=0 // pred_check
    _
  $region3: #{t3_forward.1} parent=0 // pred_check_branch
    %15 = sbr.rel (0) target = $region5
  $region4: #{t3_forward.1} parent=0 // pred_region
    _
  $region5: #{t3_forward.1} parent=0 // pred_fallthru
    _
  // Predicated region
  $region6: #{t3_forward.1} parent=0 // pred_check
    _
  $region7: #{t3_forward.1} parent=0 // pred_check_branch
    %17 = sbr.rel (0) target = $region9
  $region8: #{t3_forward.1} parent=0 // pred_region
    _
  $region9: #{t3_forward.1} parent=0 // pred_fallthru
    _
  // Predicated region
  $region10: #{t3_forward.1} parent=0 // pred_check
    _
  $region11: #{t3_forward.1} parent=0 // pred_check_branch
    %19 = sbr.rel (0) target = $region13
  $region12: #{t3_forward.1} parent=0 // pred_region
    _
  $region13: #{t3_forward.1} parent=0 // pred_fallthru
    _
  // Predicated region
  $region14: #{t3_forward.1} parent=0 // pred_check
    _
  $region15: #{t3_forward.1} parent=0 // pred_check_branch
    %21 = sbr.rel (0) target = $region17
  $region16: #{t3_forward.1} parent=0 // pred_region
    _
  $region17: #{t3_forward.1} parent=0 // pred_fallthru
    _
  // Predicated region
  $region18: #{t3_forward.1} parent=0 // pred_check
    _
  $region19: #{t3_forward.1} parent=0 // pred_check_branch
    %23 = sbr.rel (0) target = $region21
  $region20: #{t3_forward.1} parent=0 // pred_region
    _
  $region21: #{t3_forward.1} parent=0 // pred_fallthru
    _
  // Predicated region
  $region22: #{t3_forward.1} parent=0 // pred_check
    _
  $region23: #{t3_forward.1} parent=0 // pred_check_branch
    %25 = sbr.rel (0) target = $region25
  $region24: #{t3_forward.1} parent=0 // pred_region
    _
  $region25: #{t3_forward.1} parent=0 // pred_fallthru
    _
  // Predicated region
  $region26: #{t3_forward.1} parent=0 // pred_check
    _
  $region27: #{t3_forward.1} parent=0 // pred_check_branch
    %27 = sbr.rel (0) target = $region29
  $region28: #{t3_forward.1} parent=0 // pred_region
    _
  $region29: #{t3_forward.1} parent=0 // pred_fallthru
    _
  // Predicated region
  $region30: #{t3_forward.1} parent=0 // pred_check
    _
  $region31: #{t3_forward.1} parent=0 // pred_check_branch
    %29 = sbr.rel (0) target = $region33
  $region32: #{t3_forward.1} parent=0 // pred_region
    _
  $region33: #{t3_forward.1} parent=0 // pred_fallthru
    _
  // Predicated region
  $region34: #{t3_forward.1} parent=0 // pred_check
    _
  $region35: #{t3_forward.1} parent=0 // pred_check_branch
    %31 = sbr.rel (0) target = $region37
  $region36: #{t3_forward.1} parent=0 // pred_region
    _
  $region37: #{t3_forward.1} parent=0 // pred_fallthru
    _
  %v33 = vld [vmem:[%s0] sm:$0xff]
  %v34 = vld [vmem:[%s0 + $0x8] sm:$0xff]
  %v35 = vld [vmem:[%s0 + $0x10] sm:$0xff]
  %v36 = vld [vmem:[%s0 + $0x18] sm:$0xff]
  %v37 = vld [vmem:[%s0 + $0x20] sm:$0xff]
  %v38 = vld [vmem:[%s0 + $0x28] sm:$0xff]
  %v39 = vld [vmem:[%s0 + $0x30] sm:$0xff]
  %v40 = vld [vmem:[%s0 + $0x38] sm:$0xff]
  %v41 = vld [vmem:[%s0 + $0x40] sm:$0xff]
  %v42 = vld [vmem:[%s0 + $0x48] sm:$0xff]
  %v43 = vld [vmem:[%s0 + $0x50] sm:$0xff]
  %v44 = vld [vmem:[%s0 + $0x58] sm:$0xff]
  %v45 = vld [vmem:[%s0 + $0x60] sm:$0xff]
  %v46 = vld [vmem:[%s0 + $0x68] sm:$0xff]
  %v47 = vld [vmem:[%s0 + $0x70] sm:$0xff]
  %v48 = vld [vmem:[%s0 + $0x78] sm:$0xff]
  %v49 = vld [vmem:[%s0 + $0x80] sm:$0xff]
  %v50 = vld [vmem:[%s0 + $0x88] sm:$0xff]
  %v51 = vld [vmem:[%s0 + $0x90] sm:$0xff]
  %v52 = vld [vmem:[%s0 + $0x98] sm:$0xff]
  %v53 = vld [vmem:[%s0 + $0xa0] sm:$0xff]
  %v54 = vld [vmem:[%s0 + $0xa8] sm:$0xff]
  %v55 = vld [vmem:[%s0 + $0xb0] sm:$0xff]
  %v56 = vld [vmem:[%s0 + $0xb8] sm:$0xff]
  %v57 = vld [vmem:[%s1] sm:$0xff]
  %v58 = vld [vmem:[%s1 + $0x8] sm:$0xff]
  %v59 = vld [vmem:[%s1 + $0x10] sm:$0xff]
  %v60 = vld [vmem:[%s1 + $0x18] sm:$0xff]
  %v61 = vld [vmem:[%s1 + $0x20] sm:$0xff]
  %v62 = vld [vmem:[%s1 + $0x28] sm:$0xff]
  %v63 = vld [vmem:[%s1 + $0x30] sm:$0xff]
  %v64 = vld [vmem:[%s1 + $0x38] sm:$0xff]
  %v65 = vld [vmem:[%s1 + $0x40] sm:$0xff]
  %v66 = vld [vmem:[%s1 + $0x48] sm:$0xff]
  %v67 = vld [vmem:[%s1 + $0x50] sm:$0xff]
  %v68 = vld [vmem:[%s1 + $0x58] sm:$0xff]
  %v69 = vld [vmem:[%s1 + $0x60] sm:$0xff]
  %v70 = vld [vmem:[%s1 + $0x68] sm:$0xff]
  %v71 = vld [vmem:[%s1 + $0x70] sm:$0xff]
  %v72 = vld [vmem:[%s1 + $0x78] sm:$0xff]
  %v73 = vld [vmem:[%s1 + $0x80] sm:$0xff]
  %v74 = vld [vmem:[%s1 + $0x88] sm:$0xff]
  %v75 = vld [vmem:[%s1 + $0x90] sm:$0xff]
  %v76 = vld [vmem:[%s1 + $0x98] sm:$0xff]
  %v77 = vld [vmem:[%s1 + $0xa0] sm:$0xff]
  %v78 = vld [vmem:[%s1 + $0xa8] sm:$0xff]
  %v79 = vld [vmem:[%s1 + $0xb0] sm:$0xff]
  %v80 = vld [vmem:[%s1 + $0xb8] sm:$0xff]
  %v81 = vld [vmem:[%s1 + $0xc0] sm:$0xff]
  %v82 = vld [vmem:[%s1 + $0xc8] sm:$0xff]
  %v83 = vld [vmem:[%s1 + $0xd0] sm:$0xff]
  %v84 = vld [vmem:[%s1 + $0xd8] sm:$0xff]
  %v85 = vld [vmem:[%s1 + $0xe0] sm:$0xff]
  %v86 = vld [vmem:[%s1 + $0xe8] sm:$0xff]
  %v87 = vld [vmem:[%s1 + $0xf0] sm:$0xff]
  %v88 = vld [vmem:[%s1 + $0xf8] sm:$0xff]
  %v113 = vunpack.c.l.b16 %v33
  %v114 = vunpack.c.h.b16 %v33
  %v115 = vunpack.c.l.b16 %v34
  %v116 = vunpack.c.h.b16 %v34
  %v117 = vunpack.c.l.b16 %v35
  %v118 = vunpack.c.h.b16 %v35
  %v119 = vunpack.c.l.b16 %v36
  %v120 = vunpack.c.h.b16 %v36
  %v121 = vunpack.c.l.b16 %v37
  %v122 = vunpack.c.h.b16 %v37
  %v123 = vunpack.c.l.b16 %v38
  %v124 = vunpack.c.h.b16 %v38
  %v125 = vunpack.c.l.b16 %v39
  %v126 = vunpack.c.h.b16 %v39
  %v127 = vunpack.c.l.b16 %v40
  %v128 = vunpack.c.h.b16 %v40
  %v129 = vunpack.c.l.b16 %v41
  %v130 = vunpack.c.h.b16 %v41
  %v131 = vunpack.c.l.b16 %v42
  %v132 = vunpack.c.h.b16 %v42
  %v133 = vunpack.c.l.b16 %v43
  %v134 = vunpack.c.h.b16 %v43
  %v135 = vunpack.c.l.b16 %v44
  %v136 = vunpack.c.h.b16 %v44
  %v137 = vunpack.c.l.b16 %v45
  %v138 = vunpack.c.h.b16 %v45
  %v139 = vunpack.c.l.b16 %v46
  %v140 = vunpack.c.h.b16 %v46
  %v141 = vunpack.c.l.b16 %v47
  %v142 = vunpack.c.h.b16 %v47
  %v143 = vunpack.c.l.b16 %v48
  %v144 = vunpack.c.h.b16 %v48
  %v145 = vunpack.c.l.b16 %v49
  %v146 = vunpack.c.h.b16 %v49
  %v147 = vunpack.c.l.b16 %v50
  %v148 = vunpack.c.h.b16 %v50
  %v149 = vunpack.c.l.b16 %v51
  %v150 = vunpack.c.h.b16 %v51
  %v151 = vunpack.c.l.b16 %v52
  %v152 = vunpack.c.h.b16 %v52
  %v153 = vunpack.c.l.b16 %v53
  %v154 = vunpack.c.h.b16 %v53
  %v155 = vunpack.c.l.b16 %v54
  %v156 = vunpack.c.h.b16 %v54
  %v157 = vunpack.c.l.b16 %v55
  %v158 = vunpack.c.h.b16 %v55
  %v159 = vunpack.c.l.b16 %v56
  %v160 = vunpack.c.h.b16 %v56
  %v161 = vpack.c.b16 %v115, %v113
  %v162 = vpack.c.b16 %v116, %v114
  %v163 = vpack.c.b16 %v119, %v117
  %v164 = vpack.c.b16 %v120, %v118
  %v165 = vpack.c.b16 %v123, %v121
  %v166 = vpack.c.b16 %v124, %v122
  %v167 = vpack.c.b16 %v127, %v125
  %v168 = vpack.c.b16 %v128, %v126
  %v169 = vpack.c.b16 %v131, %v129
  %v170 = vpack.c.b16 %v132, %v130
  %v171 = vpack.c.b16 %v135, %v133
  %v172 = vpack.c.b16 %v136, %v134
  %v173 = vpack.c.b16 %v139, %v137
  %v174 = vpack.c.b16 %v140, %v138
  %v175 = vpack.c.b16 %v143, %v141
  %v176 = vpack.c.b16 %v144, %v142
  %v177 = vpack.c.b16 %v147, %v145
  %v178 = vpack.c.b16 %v148, %v146
  %v179 = vpack.c.b16 %v151, %v149
  %v180 = vpack.c.b16 %v152, %v150
  %v181 = vpack.c.b16 %v155, %v153
  %v182 = vpack.c.b16 %v156, %v154
  %v183 = vpack.c.b16 %v159, %v157
  %v184 = vpack.c.b16 %v160, %v158
  %v241 = vunpack.c.l.b16 %v57
  %v242 = vunpack.c.h.b16 %v57
  %v243 = vunpack.c.l.b16 %v58
  %v244 = vunpack.c.h.b16 %v58
  %v245 = vunpack.c.l.b16 %v59
  %v246 = vunpack.c.h.b16 %v59
  %v247 = vunpack.c.l.b16 %v60
  %v248 = vunpack.c.h.b16 %v60
  %v249 = vunpack.c.l.b16 %v61
  %v250 = vunpack.c.h.b16 %v61
  %v251 = vunpack.c.l.b16 %v62
  %v252 = vunpack.c.h.b16 %v62
  %v253 = vunpack.c.l.b16 %v63
  %v254 = vunpack.c.h.b16 %v63
  %v255 = vunpack.c.l.b16 %v64
  %v256 = vunpack.c.h.b16 %v64
  %v257 = vunpack.c.l.b16 %v65
  %v258 = vunpack.c.h.b16 %v65
  %v259 = vunpack.c.l.b16 %v66
  %v260 = vunpack.c.h.b16 %v66
  %v261 = vunpack.c.l.b16 %v67
  %v262 = vunpack.c.h.b16 %v67
  %v263 = vunpack.c.l.b16 %v68
  %v264 = vunpack.c.h.b16 %v68
  %v265 = vunpack.c.l.b16 %v69
  %v266 = vunpack.c.h.b16 %v69
  %v267 = vunpack.c.l.b16 %v70
  %v268 = vunpack.c.h.b16 %v70
  %v269 = vunpack.c.l.b16 %v71
  %v270 = vunpack.c.h.b16 %v71
  %v271 = vunpack.c.l.b16 %v72
  %v272 = vunpack.c.h.b16 %v72
  %v273 = vunpack.c.l.b16 %v73
  %v274 = vunpack.c.h.b16 %v73
  %v275 = vunpack.c.l.b16 %v74
  %v276 = vunpack.c.h.b16 %v74
  %v277 = vunpack.c.l.b16 %v75
  %v278 = vunpack.c.h.b16 %v75
  %v279 = vunpack.c.l.b16 %v76
  %v280 = vunpack.c.h.b16 %v76
  %v281 = vunpack.c.l.b16 %v77
  %v282 = vunpack.c.h.b16 %v77
  %v283 = vunpack.c.l.b16 %v78
  %v284 = vunpack.c.h.b16 %v78
  %v285 = vunpack.c.l.b16 %v79
  %v286 = vunpack.c.h.b16 %v79
  %v287 = vunpack.c.l.b16 %v80
  %v288 = vunpack.c.h.b16 %v80
  %v289 = vunpack.c.l.b16 %v81
  %v290 = vunpack.c.h.b16 %v81
  %v291 = vunpack.c.l.b16 %v82
  %v292 = vunpack.c.h.b16 %v82
  %v293 = vunpack.c.l.b16 %v83
  %v294 = vunpack.c.h.b16 %v83
  %v295 = vunpack.c.l.b16 %v84
  %v296 = vunpack.c.h.b16 %v84
  %v297 = vunpack.c.l.b16 %v85
  %v298 = vunpack.c.h.b16 %v85
  %v299 = vunpack.c.l.b16 %v86
  %v300 = vunpack.c.h.b16 %v86
  %v301 = vunpack.c.l.b16 %v87
  %v302 = vunpack.c.h.b16 %v87
  %v303 = vunpack.c.l.b16 %v88
  %v304 = vunpack.c.h.b16 %v88
  %v305 = vpack.c.b16 %v243, %v241
  %v306 = vpack.c.b16 %v244, %v242
  %v307 = vpack.c.b16 %v247, %v245
  %v308 = vpack.c.b16 %v248, %v246
  %v309 = vpack.c.b16 %v251, %v249
  %v310 = vpack.c.b16 %v252, %v250
  %v311 = vpack.c.b16 %v255, %v253
  %v312 = vpack.c.b16 %v256, %v254
  %v313 = vpack.c.b16 %v259, %v257
  %v314 = vpack.c.b16 %v260, %v258
  %v315 = vpack.c.b16 %v263, %v261
  %v316 = vpack.c.b16 %v264, %v262
  %v317 = vpack.c.b16 %v267, %v265
  %v318 = vpack.c.b16 %v268, %v266
  %v319 = vpack.c.b16 %v271, %v269
  %v320 = vpack.c.b16 %v272, %v270
  %v321 = vpack.c.b16 %v275, %v273
  %v322 = vpack.c.b16 %v276, %v274
  %v323 = vpack.c.b16 %v279, %v277
  %v324 = vpack.c.b16 %v280, %v278
  %v325 = vpack.c.b16 %v283, %v281
  %v326 = vpack.c.b16 %v284, %v282
  %v327 = vpack.c.b16 %v287, %v285
  %v328 = vpack.c.b16 %v288, %v286
  %v329 = vpack.c.b16 %v291, %v289
  %v330 = vpack.c.b16 %v292, %v290
  %v331 = vpack.c.b16 %v295, %v293
  %v332 = vpack.c.b16 %v296, %v294
  %v333 = vpack.c.b16 %v299, %v297
  %v334 = vpack.c.b16 %v300, %v298
  %v335 = vpack.c.b16 %v303, %v301
  %v336 = vpack.c.b16 %v304, %v302
  %369 = vmatprep.subr.bf16.mxu0 %v320
  %370 = vmatpush1.bf16.msra.mxu0 %v319
  %371 = vmatprep.subr.bf16.mxu0 %v318
  %372 = vmatpush1.bf16.msra.mxu0 %v317
  %373 = vmatprep.subr.bf16.mxu0 %v316
  %374 = vmatpush1.bf16.msra.mxu0 %v315
  %375 = vmatprep.subr.bf16.mxu0 %v314
  %376 = vmatpush1.bf16.msra.mxu0 %v313
  %377 = vmatprep.subr.bf16.mxu0 %v312
  %378 = vmatpush1.bf16.msra.mxu0 %v311
  %379 = vmatprep.subr.bf16.mxu0 %v310
  %380 = vmatpush1.bf16.msra.mxu0 %v309
  %381 = vmatprep.subr.bf16.mxu0 %v308
  %382 = vmatpush1.bf16.msra.mxu0 %v307
  %383 = vmatprep.subr.bf16.mxu0 %v306
  %384 = vmatpush1.bf16.msra.mxu0 %v305
  %385 = vmatprep.subr.bf16.mxu0 %v336
  %386 = vmatpush2.bf16.msra.mxu0 %v335
  %387 = vmatprep.subr.bf16.mxu0 %v334
  %388 = vmatpush2.bf16.msra.mxu0 %v333
  %389 = vmatprep.subr.bf16.mxu0 %v332
  %390 = vmatpush2.bf16.msra.mxu0 %v331
  %391 = vmatprep.subr.bf16.mxu0 %v330
  %392 = vmatpush2.bf16.msra.mxu0 %v329
  %393 = vmatprep.subr.bf16.mxu0 %v328
  %394 = vmatpush2.bf16.msra.mxu0 %v327
  %395 = vmatprep.subr.bf16.mxu0 %v326
  %396 = vmatpush2.bf16.msra.mxu0 %v325
  %397 = vmatprep.subr.bf16.mxu0 %v324
  %398 = vmatpush2.bf16.msra.mxu0 %v323
  %399 = vmatprep.subr.bf16.mxu0 %v322
  %400 = vmatpush2.bf16.msra.mxu0 %v321
  %401 = vmatprep.mubr.bf16.mxu0 %v162
  %402 = vmatmul.mubr.bf16.gmra.mxu0 %v161
  %v403 = vpop.f32.mrf.mxu0
  %v404 = vadd.f32 0.0, %v403
  %v405 = vpop.f32.mrf.mxu0
  %v406 = vadd.f32 0.0, %v405
  %v407 = vpop.f32.mrf.mxu0
  %v408 = vadd.f32 0.0, %v407
  %v409 = vpop.f32.mrf.mxu0
  %v410 = vadd.f32 0.0, %v409
  %411 = vmatprep.mubr.bf16.mxu0 %v164
  %412 = vmatmul.mubr.bf16.gmra.mxu0 %v163
  %v413 = vpop.f32.mrf.mxu0
  %v414 = vadd.f32 0.0, %v413
  %v415 = vpop.f32.mrf.mxu0
  %v416 = vadd.f32 0.0, %v415
  %v417 = vpop.f32.mrf.mxu0
  %v418 = vadd.f32 0.0, %v417
  %v419 = vpop.f32.mrf.mxu0
  %v420 = vadd.f32 0.0, %v419
  %421 = vmatprep.mubr.bf16.mxu0 %v166
  %422 = vmatmul.mubr.bf16.gmra.mxu0 %v165
  %v423 = vpop.f32.mrf.mxu0
  %v424 = vadd.f32 0.0, %v423
  %v425 = vpop.f32.mrf.mxu0
  %v426 = vadd.f32 0.0, %v425
  %v427 = vpop.f32.mrf.mxu0
  %v428 = vadd.f32 0.0, %v427
  %v429 = vpop.f32.mrf.mxu0
  %v430 = vadd.f32 0.0, %v429
  %431 = vmatprep.mubr.bf16.mxu0 %v168
  %432 = vmatmul.mubr.bf16.gmra.mxu0 %v167
  %v433 = vpop.f32.mrf.mxu0
  %v434 = vadd.f32 0.0, %v433
  %v435 = vpop.f32.mrf.mxu0
  %v436 = vadd.f32 0.0, %v435
  %v437 = vpop.f32.mrf.mxu0
  %v438 = vadd.f32 0.0, %v437
  %v439 = vpop.f32.mrf.mxu0
  %v440 = vadd.f32 0.0, %v439
  %441 = vmatprep.mubr.bf16.mxu0 %v170
  %442 = vmatmul.mubr.bf16.gmra.mxu0 %v169
  %v443 = vpop.f32.mrf.mxu0
  %v444 = vadd.f32 0.0, %v443
  %v445 = vpop.f32.mrf.mxu0
  %v446 = vadd.f32 0.0, %v445
  %v447 = vpop.f32.mrf.mxu0
  %v448 = vadd.f32 0.0, %v447
  %v449 = vpop.f32.mrf.mxu0
  %v450 = vadd.f32 0.0, %v449
  %451 = vmatprep.mubr.bf16.mxu0 %v172
  %452 = vmatmul.mubr.bf16.gmra.mxu0 %v171
  %v453 = vpop.f32.mrf.mxu0
  %v454 = vadd.f32 0.0, %v453
  %v455 = vpop.f32.mrf.mxu0
  %v456 = vadd.f32 0.0, %v455
  %v457 = vpop.f32.mrf.mxu0
  %v458 = vadd.f32 0.0, %v457
  %v459 = vpop.f32.mrf.mxu0
  %v460 = vadd.f32 0.0, %v459
  %461 = vmatprep.mubr.bf16.mxu0 %v174
  %462 = vmatmul.mubr.bf16.gmra.mxu0 %v173
  %v463 = vpop.f32.mrf.mxu0
  %v464 = vadd.f32 0.0, %v463
  %v465 = vpop.f32.mrf.mxu0
  %v466 = vadd.f32 0.0, %v465
  %v467 = vpop.f32.mrf.mxu0
  %v468 = vadd.f32 0.0, %v467
  %v469 = vpop.f32.mrf.mxu0
  %v470 = vadd.f32 0.0, %v469
  %471 = vmatprep.mubr.bf16.mxu0 %v176
  %472 = vmatmul.mubr.bf16.gmra.mxu0 %v175
  %v473 = vpop.f32.mrf.mxu0
  %v474 = vadd.f32 0.0, %v473
  %v475 = vpop.f32.mrf.mxu0
  %v476 = vadd.f32 0.0, %v475
  %v477 = vpop.f32.mrf.mxu0
  %v478 = vadd.f32 0.0, %v477
  %v479 = vpop.f32.mrf.mxu0
  %v480 = vadd.f32 0.0, %v479
  %481 = vmatprep.mubr.bf16.mxu0 %v178
  %482 = vmatmul.mubr.bf16.gmra.mxu0 %v177
  %v483 = vpop.f32.mrf.mxu0
  %v484 = vadd.f32 0.0, %v483
  %v485 = vpop.f32.mrf.mxu0
  %v486 = vadd.f32 0.0, %v485
  %v487 = vpop.f32.mrf.mxu0
  %v488 = vadd.f32 0.0, %v487
  %v489 = vpop.f32.mrf.mxu0
  %v490 = vadd.f32 0.0, %v489
  %491 = vmatprep.mubr.bf16.mxu0 %v180
  %492 = vmatmul.mubr.bf16.gmra.mxu0 %v179
  %v493 = vpop.f32.mrf.mxu0
  %v494 = vadd.f32 0.0, %v493
  %v495 = vpop.f32.mrf.mxu0
  %v496 = vadd.f32 0.0, %v495
  %v497 = vpop.f32.mrf.mxu0
  %v498 = vadd.f32 0.0, %v497
  %v499 = vpop.f32.mrf.mxu0
  %v500 = vadd.f32 0.0, %v499
  %501 = vmatprep.mubr.bf16.mxu0 %v182
  %502 = vmatmul.mubr.bf16.gmra.mxu0 %v181
  %v503 = vpop.f32.mrf.mxu0
  %v504 = vadd.f32 0.0, %v503
  %v505 = vpop.f32.mrf.mxu0
  %v506 = vadd.f32 0.0, %v505
  %v507 = vpop.f32.mrf.mxu0
  %v508 = vadd.f32 0.0, %v507
  %v509 = vpop.f32.mrf.mxu0
  %v510 = vadd.f32 0.0, %v509
  %511 = vmatprep.mubr.bf16.mxu0 %v184
  %512 = vmatmul.mubr.bf16.gmra.mxu0 %v183
  %v513 = vpop.f32.mrf.mxu0
  %v514 = vadd.f32 0.0, %v513
  %v515 = vpop.f32.mrf.mxu0
  %v516 = vadd.f32 0.0, %v515
  %v517 = vpop.f32.mrf.mxu0
  %v518 = vadd.f32 0.0, %v517
  %v519 = vpop.f32.mrf.mxu0
  %v520 = vadd.f32 0.0, %v519
  %521 = vdwg.mxu0
  %v522 = vmax.f32 %v404, %v408
  %v523 = vmax.f32 %v406, %v410
  %v524 = vmax.f32 %v414, %v418
  %v525 = vmax.f32 %v416, %v420
  %v526 = vmax.f32 %v424, %v428
  %v527 = vmax.f32 %v426, %v430
  %v528 = vmax.f32 %v434, %v438
  %v529 = vmax.f32 %v436, %v440
  %v530 = vmax.f32 %v444, %v448
  %v531 = vmax.f32 %v446, %v450
  %v532 = vmax.f32 %v454, %v458
  %v533 = vmax.f32 %v456, %v460
  %v534 = vmax.f32 %v464, %v468
  %v535 = vmax.f32 %v466, %v470
  %v536 = vmax.f32 %v474, %v478
  %v537 = vmax.f32 %v476, %v480
  %v538 = vmax.f32 %v484, %v488
  %v539 = vmax.f32 %v486, %v490
  %v540 = vmax.f32 %v494, %v498
  %v541 = vmax.f32 %v496, %v500
  %v542 = vmax.f32 %v504, %v508
  %v543 = vmax.f32 %v506, %v510
  %v544 = vmax.f32 %v514, %v518
  %v545 = vmax.f32 %v516, %v520
  %v546 = vmax.f32 %v522, %v523
  %v547 = vmax.f32 %v524, %v525
  %v548 = vmax.f32 %v526, %v527
  %v549 = vmax.f32 %v528, %v529
  %v550 = vmax.f32 %v530, %v531
  %v551 = vmax.f32 %v532, %v533
  %v552 = vmax.f32 %v534, %v535
  %v553 = vmax.f32 %v536, %v537
  %v554 = vmax.f32 %v538, %v539
  %v555 = vmax.f32 %v540, %v541
  %v556 = vmax.f32 %v542, %v543
  %v557 = vmax.f32 %v544, %v545
  %v558 = vld [vmem:[%s2] sm:$0x1]
  %v560 = vlaneseq
  %v561 = vshrl.u32 %v560, 7
  %v562 = vsub.s32 0, %v561
  %v563 = vrot.slane %v558, %v562
  %v565 = vadd.f32 %v546, %v563
  %v566 = vadd.f32 %v547, %v563
  %v567 = vadd.f32 %v548, %v563
  %v568 = vadd.f32 %v549, %v563
  %v569 = vadd.f32 %v550, %v563
  %v570 = vadd.f32 %v551, %v563
  %v571 = vadd.f32 %v552, %v563
  %v572 = vadd.f32 %v553, %v563
  %v573 = vadd.f32 %v554, %v563
  %v574 = vadd.f32 %v555, %v563
  %v575 = vadd.f32 %v556, %v563
  %v576 = vadd.f32 %v557, %v563
  %v577 = vmax.f32 %v565, 0.0
  %v578 = vmax.f32 %v566, 0.0
  %v579 = vmax.f32 %v567, 0.0
  %v580 = vmax.f32 %v568, 0.0
  %v581 = vmax.f32 %v569, 0.0
  %v582 = vmax.f32 %v570, 0.0
  %v583 = vmax.f32 %v571, 0.0
  %v584 = vmax.f32 %v572, 0.0
  %v585 = vmax.f32 %v573, 0.0
  %v586 = vmax.f32 %v574, 0.0
  %v587 = vmax.f32 %v575, 0.0
  %v588 = vmax.f32 %v576, 0.0
  %v589 = vpack.c.bf16 %v577, %v577
  %v590 = vpack.c.bf16 %v578, %v578
  %v591 = vpack.c.bf16 %v579, %v579
  %v592 = vpack.c.bf16 %v580, %v580
  %v593 = vpack.c.bf16 %v581, %v581
  %v594 = vpack.c.bf16 %v582, %v582
  %v595 = vpack.c.bf16 %v583, %v583
  %v596 = vpack.c.bf16 %v584, %v584
  %v597 = vpack.c.bf16 %v585, %v585
  %v598 = vpack.c.bf16 %v586, %v586
  %v599 = vpack.c.bf16 %v587, %v587
  %v600 = vpack.c.bf16 %v588, %v588
  %601 = vst [vmem:[#allocation2] sm:$0xf] %v589
  %602 = vst [vmem:[#allocation2 + $0x4] sm:$0xf] %v590
  %603 = vst [vmem:[#allocation2 + $0x8] sm:$0xf] %v591
  %604 = vst [vmem:[#allocation2 + $0xc] sm:$0xf] %v592
  %605 = vst [vmem:[#allocation2 + $0x10] sm:$0xf] %v593
  %606 = vst [vmem:[#allocation2 + $0x14] sm:$0xf] %v594
  %607 = vst [vmem:[#allocation2 + $0x18] sm:$0xf] %v595
  %608 = vst [vmem:[#allocation2 + $0x1c] sm:$0xf] %v596
  %609 = vst [vmem:[#allocation2 + $0x20] sm:$0xf] %v597
  %610 = vst [vmem:[#allocation2 + $0x24] sm:$0xf] %v598
  %611 = vst [vmem:[#allocation2 + $0x28] sm:$0xf] %v599
  %612 = vst [vmem:[#allocation2 + $0x2c] sm:$0xf] %v600
  %v613 = vld [vmem:[#allocation2] sm:$0xf]
  %v614 = vld [vmem:[#allocation2 + $0x4] sm:$0xf]
  %v615 = vld [vmem:[#allocation2 + $0x8] sm:$0xf]
  %v616 = vld [vmem:[#allocation2 + $0xc] sm:$0xf]
  %v617 = vld [vmem:[#allocation2 + $0x10] sm:$0xf]
  %v618 = vld [vmem:[#allocation2 + $0x14] sm:$0xf]
  %v619 = vld [vmem:[#allocation2 + $0x18] sm:$0xf]
  %v620 = vld [vmem:[#allocation2 + $0x1c] sm:$0xf]
  %v621 = vld [vmem:[%s3] sm:$0xf]
  %v622 = vld [vmem:[%s3 + $0x4] sm:$0xf]
  %v623 = vld [vmem:[%s3 + $0x8] sm:$0xf]
  %v624 = vld [vmem:[%s3 + $0xc] sm:$0xf]
  %v625 = vld [vmem:[%s3 + $0x10] sm:$0xf]
  %v626 = vld [vmem:[%s3 + $0x14] sm:$0xf]
  %v627 = vld [vmem:[%s3 + $0x18] sm:$0xf]
  %v628 = vld [vmem:[%s3 + $0x1c] sm:$0xf]
  %v629 = vld [vmem:[%s3 + $0x20] sm:$0xf]
  %v630 = vld [vmem:[%s3 + $0x24] sm:$0xf]
  %v631 = vld [vmem:[%s3 + $0x28] sm:$0xf]
  %v632 = vld [vmem:[%s3 + $0x2c] sm:$0xf]
  %v633 = vld [vmem:[%s3 + $0x30] sm:$0xf]
  %v634 = vld [vmem:[%s3 + $0x34] sm:$0xf]
  %v635 = vld [vmem:[%s3 + $0x38] sm:$0xf]
  %v636 = vld [vmem:[%s3 + $0x3c] sm:$0xf]
  %s637 = scalar_lea.vmem [#allocation2], 4
  %v638 = vld [vmem:[%s637] sm:$0xf]
  %v639 = vld [vmem:[%s637 + $0x4] sm:$0xf]
  %v640 = vld [vmem:[%s637 + $0x8] sm:$0xf]
  %v641 = vld [vmem:[%s637 + $0xc] sm:$0xf]
  %v642 = vld [vmem:[%s637 + $0x10] sm:$0xf]
  %v643 = vld [vmem:[%s637 + $0x14] sm:$0xf]
  %v644 = vld [vmem:[%s637 + $0x18] sm:$0xf]
  %v645 = vld [vmem:[%s637 + $0x1c] sm:$0xf]
  %s646 = scalar_lea.vmem %s3, 64
  %v647 = vld [vmem:[%s646] sm:$0xf]
  %v648 = vld [vmem:[%s646 + $0x4] sm:$0xf]
  %v649 = vld [vmem:[%s646 + $0x8] sm:$0xf]
  %v650 = vld [vmem:[%s646 + $0xc] sm:$0xf]
  %v651 = vld [vmem:[%s646 + $0x10] sm:$0xf]
  %v652 = vld [vmem:[%s646 + $0x14] sm:$0xf]
  %v653 = vld [vmem:[%s646 + $0x18] sm:$0xf]
  %v654 = vld [vmem:[%s646 + $0x1c] sm:$0xf]
  %v655 = vld [vmem:[%s646 + $0x20] sm:$0xf]
  %v656 = vld [vmem:[%s646 + $0x24] sm:$0xf]
  %v657 = vld [vmem:[%s646 + $0x28] sm:$0xf]
  %v658 = vld [vmem:[%s646 + $0x2c] sm:$0xf]
  %v659 = vld [vmem:[%s646 + $0x30] sm:$0xf]
  %v660 = vld [vmem:[%s646 + $0x34] sm:$0xf]
  %v661 = vld [vmem:[%s646 + $0x38] sm:$0xf]
  %v662 = vld [vmem:[%s646 + $0x3c] sm:$0xf]
  %v671 = vunpack.c.l.b16 %v638
  %v672 = vunpack.c.l.b16 %v639
  %v673 = vunpack.c.l.b16 %v640
  %v674 = vunpack.c.l.b16 %v641
  %v675 = vunpack.c.l.b16 %v642
  %v676 = vunpack.c.l.b16 %v643
  %v677 = vunpack.c.l.b16 %v644
  %v678 = vunpack.c.l.b16 %v645
  %v679 = vpack.c.b16 %v672, %v671
  %v680 = vpack.c.b16 %v674, %v673
  %v681 = vpack.c.b16 %v676, %v675
  %v682 = vpack.c.b16 %v678, %v677
  %v703 = vunpack.c.l.b16 %v647
  %v704 = vunpack.c.l.b16 %v648
  %v705 = vunpack.c.l.b16 %v649
  %v706 = vunpack.c.l.b16 %v650
  %v707 = vunpack.c.l.b16 %v651
  %v708 = vunpack.c.l.b16 %v652
  %v709 = vunpack.c.l.b16 %v653
  %v710 = vunpack.c.l.b16 %v654
  %v711 = vunpack.c.l.b16 %v655
  %v712 = vunpack.c.l.b16 %v656
  %v713 = vunpack.c.l.b16 %v657
  %v714 = vunpack.c.l.b16 %v658
  %v715 = vunpack.c.l.b16 %v659
  %v716 = vunpack.c.l.b16 %v660
  %v717 = vunpack.c.l.b16 %v661
  %v718 = vunpack.c.l.b16 %v662
  %v719 = vpack.c.b16 %v704, %v703
  %v720 = vpack.c.b16 %v706, %v705
  %v721 = vpack.c.b16 %v708, %v707
  %v722 = vpack.c.b16 %v710, %v709
  %v723 = vpack.c.b16 %v712, %v711
  %v724 = vpack.c.b16 %v714, %v713
  %v725 = vpack.c.b16 %v716, %v715
  %v726 = vpack.c.b16 %v718, %v717
  %735 = vmatprep.subr.bf16.mxu0 0
  %736 = vmatpush1.bf16.msra.mxu0 %v726
  %737 = vmatprep.subr.bf16.mxu0 0
  %738 = vmatpush1.bf16.msra.mxu0 %v725
  %739 = vmatprep.subr.bf16.mxu0 0
  %740 = vmatpush1.bf16.msra.mxu0 %v724
  %741 = vmatprep.subr.bf16.mxu0 0
  %742 = vmatpush1.bf16.msra.mxu0 %v723
  %743 = vmatprep.subr.bf16.mxu0 0
  %744 = vmatpush1.bf16.msra.mxu0 %v722
  %745 = vmatprep.subr.bf16.mxu0 0
  %746 = vmatpush1.bf16.msra.mxu0 %v721
  %747 = vmatprep.subr.bf16.mxu0 0
  %748 = vmatpush1.bf16.msra.mxu0 %v720
  %749 = vmatprep.subr.bf16.mxu0 0
  %750 = vmatpush1.bf16.msra.mxu0 %v719
  %751 = vmatprep.subr.bf16.mxu0 0
  %752 = vmatpush2.bf16.msra.mxu0 0
  %753 = vmatprep.subr.bf16.mxu0 0
  %754 = vmatpush2.bf16.msra.mxu0 0
  %755 = vmatprep.subr.bf16.mxu0 0
  %756 = vmatpush2.bf16.msra.mxu0 0
  %757 = vmatprep.subr.bf16.mxu0 0
  %758 = vmatpush2.bf16.msra.mxu0 0
  %759 = vmatprep.subr.bf16.mxu0 0
  %760 = vmatpush2.bf16.msra.mxu0 0
  %761 = vmatprep.subr.bf16.mxu0 0
  %762 = vmatpush2.bf16.msra.mxu0 0
  %763 = vmatprep.subr.bf16.mxu0 0
  %764 = vmatpush2.bf16.msra.mxu0 0
  %765 = vmatprep.subr.bf16.mxu0 0
  %766 = vmatpush2.bf16.msra.mxu0 0
  %767 = vmatprep.mubr.bf16.mxu0 0
  %768 = vmatmul.mubr.bf16.gmra.mxu0 %v679
  %v769 = vpop.f32.mrf.mxu0
  %v770 = vadd.f32 0.0, %v769
  %v771 = vpop.f32.mrf.mxu0
  %v772 = vpop.f32.mrf.mxu0
  %v773 = vadd.f32 0.0, %v772
  %v774 = vpop.f32.mrf.mxu0
  %775 = vmatprep.mubr.bf16.mxu0 0
  %776 = vmatmul.mubr.bf16.gmra.mxu0 %v680
  %v777 = vpop.f32.mrf.mxu0
  %v778 = vadd.f32 0.0, %v777
  %v779 = vpop.f32.mrf.mxu0
  %v780 = vpop.f32.mrf.mxu0
  %v781 = vadd.f32 0.0, %v780
  %v782 = vpop.f32.mrf.mxu0
  %783 = vmatprep.mubr.bf16.mxu0 0
  %784 = vmatmul.mubr.bf16.gmra.mxu0 %v681
  %v785 = vpop.f32.mrf.mxu0
  %v786 = vadd.f32 0.0, %v785
  %v787 = vpop.f32.mrf.mxu0
  %v788 = vpop.f32.mrf.mxu0
  %v789 = vadd.f32 0.0, %v788
  %v790 = vpop.f32.mrf.mxu0
  %791 = vmatprep.mubr.bf16.mxu0 0
  %792 = vmatmul.mubr.bf16.gmra.mxu0 %v682
  %v793 = vpop.f32.mrf.mxu0
  %v794 = vadd.f32 0.0, %v793
  %v795 = vpop.f32.mrf.mxu0
  %v796 = vpop.f32.mrf.mxu0
  %v797 = vadd.f32 0.0, %v796
  %v798 = vpop.f32.mrf.mxu0
  %799 = vdwg.mxu0
  %v808 = vunpack.c.l.b16 %v613
  %v809 = vunpack.c.l.b16 %v614
  %v810 = vunpack.c.l.b16 %v615
  %v811 = vunpack.c.l.b16 %v616
  %v812 = vunpack.c.l.b16 %v617
  %v813 = vunpack.c.l.b16 %v618
  %v814 = vunpack.c.l.b16 %v619
  %v815 = vunpack.c.l.b16 %v620
  %v816 = vpack.c.b16 %v809, %v808
  %v817 = vpack.c.b16 %v811, %v810
  %v818 = vpack.c.b16 %v813, %v812
  %v819 = vpack.c.b16 %v815, %v814
  %v840 = vunpack.c.l.b16 %v621
  %v841 = vunpack.c.l.b16 %v622
  %v842 = vunpack.c.l.b16 %v623
  %v843 = vunpack.c.l.b16 %v624
  %v844 = vunpack.c.l.b16 %v625
  %v845 = vunpack.c.l.b16 %v626
  %v846 = vunpack.c.l.b16 %v627
  %v847 = vunpack.c.l.b16 %v628
  %v848 = vunpack.c.l.b16 %v629
  %v849 = vunpack.c.l.b16 %v630
  %v850 = vunpack.c.l.b16 %v631
  %v851 = vunpack.c.l.b16 %v632
  %v852 = vunpack.c.l.b16 %v633
  %v853 = vunpack.c.l.b16 %v634
  %v854 = vunpack.c.l.b16 %v635
  %v855 = vunpack.c.l.b16 %v636
  %v856 = vpack.c.b16 %v841, %v840
  %v857 = vpack.c.b16 %v843, %v842
  %v858 = vpack.c.b16 %v845, %v844
  %v859 = vpack.c.b16 %v847, %v846
  %v860 = vpack.c.b16 %v849, %v848
  %v861 = vpack.c.b16 %v851, %v850
  %v862 = vpack.c.b16 %v853, %v852
  %v863 = vpack.c.b16 %v855, %v854
  %872 = vmatprep.subr.bf16.mxu0 0
  %873 = vmatpush1.bf16.msra.mxu0 %v863
  %874 = vmatprep.subr.bf16.mxu0 0
  %875 = vmatpush1.bf16.msra.mxu0 %v862
  %876 = vmatprep.subr.bf16.mxu0 0
  %877 = vmatpush1.bf16.msra.mxu0 %v861
  %878 = vmatprep.subr.bf16.mxu0 0
  %879 = vmatpush1.bf16.msra.mxu0 %v860
  %880 = vmatprep.subr.bf16.mxu0 0
  %881 = vmatpush1.bf16.msra.mxu0 %v859
  %882 = vmatprep.subr.bf16.mxu0 0
  %883 = vmatpush1.bf16.msra.mxu0 %v858
  %884 = vmatprep.subr.bf16.mxu0 0
  %885 = vmatpush1.bf16.msra.mxu0 %v857
  %886 = vmatprep.subr.bf16.mxu0 0
  %887 = vmatpush1.bf16.msra.mxu0 %v856
  %888 = vmatprep.subr.bf16.mxu0 0
  %889 = vmatpush2.bf16.msra.mxu0 0
  %890 = vmatprep.subr.bf16.mxu0 0
  %891 = vmatpush2.bf16.msra.mxu0 0
  %892 = vmatprep.subr.bf16.mxu0 0
  %893 = vmatpush2.bf16.msra.mxu0 0
  %894 = vmatprep.subr.bf16.mxu0 0
  %895 = vmatpush2.bf16.msra.mxu0 0
  %896 = vmatprep.subr.bf16.mxu0 0
  %897 = vmatpush2.bf16.msra.mxu0 0
  %898 = vmatprep.subr.bf16.mxu0 0
  %899 = vmatpush2.bf16.msra.mxu0 0
  %900 = vmatprep.subr.bf16.mxu0 0
  %901 = vmatpush2.bf16.msra.mxu0 0
  %902 = vmatprep.subr.bf16.mxu0 0
  %903 = vmatpush2.bf16.msra.mxu0 0
  %904 = vmatprep.mubr.bf16.mxu0 0
  %905 = vmatmul.mubr.bf16.gmra.mxu0 %v816
  %v906 = vpop.f32.mrf.mxu0
  %v907 = vadd.f32 %v770, %v906
  %v908 = vpop.f32.mrf.mxu0
  %v909 = vpop.f32.mrf.mxu0
  %v910 = vadd.f32 %v773, %v909
  %v911 = vpop.f32.mrf.mxu0
  %912 = vmatprep.mubr.bf16.mxu0 0
  %913 = vmatmul.mubr.bf16.gmra.mxu0 %v817
  %v914 = vpop.f32.mrf.mxu0
  %v915 = vadd.f32 %v778, %v914
  %v916 = vpop.f32.mrf.mxu0
  %v917 = vpop.f32.mrf.mxu0
  %v918 = vadd.f32 %v781, %v917
  %v919 = vpop.f32.mrf.mxu0
  %920 = vmatprep.mubr.bf16.mxu0 0
  %921 = vmatmul.mubr.bf16.gmra.mxu0 %v818
  %v922 = vpop.f32.mrf.mxu0
  %v923 = vadd.f32 %v786, %v922
  %v924 = vpop.f32.mrf.mxu0
  %v925 = vpop.f32.mrf.mxu0
  %v926 = vadd.f32 %v789, %v925
  %v927 = vpop.f32.mrf.mxu0
  %928 = vmatprep.mubr.bf16.mxu0 0
  %929 = vmatmul.mubr.bf16.gmra.mxu0 %v819
  %v930 = vpop.f32.mrf.mxu0
  %v931 = vadd.f32 %v794, %v930
  %v932 = vpop.f32.mrf.mxu0
  %v933 = vpop.f32.mrf.mxu0
  %v934 = vadd.f32 %v797, %v933
  %v935 = vpop.f32.mrf.mxu0
  %936 = vdwg.mxu0
  %s937 = scalar_lea.vmem [#allocation2], 8
  %v938 = vld [vmem:[%s937] sm:$0xf]
  %v939 = vld [vmem:[%s937 + $0x4] sm:$0xf]
  %v940 = vld [vmem:[%s937 + $0x8] sm:$0xf]
  %v941 = vld [vmem:[%s937 + $0xc] sm:$0xf]
  %v942 = vld [vmem:[%s937 + $0x10] sm:$0xf]
  %v943 = vld [vmem:[%s937 + $0x14] sm:$0xf]
  %v944 = vld [vmem:[%s937 + $0x18] sm:$0xf]
  %v945 = vld [vmem:[%s937 + $0x1c] sm:$0xf]
  %s946 = scalar_lea.vmem %s3, 128
  %v947 = vld [vmem:[%s946] sm:$0xf]
  %v948 = vld [vmem:[%s946 + $0x4] sm:$0xf]
  %v949 = vld [vmem:[%s946 + $0x8] sm:$0xf]
  %v950 = vld [vmem:[%s946 + $0xc] sm:$0xf]
  %v951 = vld [vmem:[%s946 + $0x10] sm:$0xf]
  %v952 = vld [vmem:[%s946 + $0x14] sm:$0xf]
  %v953 = vld [vmem:[%s946 + $0x18] sm:$0xf]
  %v954 = vld [vmem:[%s946 + $0x1c] sm:$0xf]
  %v955 = vld [vmem:[%s946 + $0x20] sm:$0xf]
  %v956 = vld [vmem:[%s946 + $0x24] sm:$0xf]
  %v957 = vld [vmem:[%s946 + $0x28] sm:$0xf]
  %v958 = vld [vmem:[%s946 + $0x2c] sm:$0xf]
  %v959 = vld [vmem:[%s946 + $0x30] sm:$0xf]
  %v960 = vld [vmem:[%s946 + $0x34] sm:$0xf]
  %v961 = vld [vmem:[%s946 + $0x38] sm:$0xf]
  %v962 = vld [vmem:[%s946 + $0x3c] sm:$0xf]
  %v971 = vunpack.c.l.b16 %v938
  %v972 = vunpack.c.l.b16 %v939
  %v973 = vunpack.c.l.b16 %v940
  %v974 = vunpack.c.l.b16 %v941
  %v975 = vunpack.c.l.b16 %v942
  %v976 = vunpack.c.l.b16 %v943
  %v977 = vunpack.c.l.b16 %v944
  %v978 = vunpack.c.l.b16 %v945
  %v979 = vpack.c.b16 %v972, %v971
  %v980 = vpack.c.b16 %v974, %v973
  %v981 = vpack.c.b16 %v976, %v975
  %v982 = vpack.c.b16 %v978, %v977
  %v1003 = vunpack.c.l.b16 %v947
  %v1004 = vunpack.c.l.b16 %v948
  %v1005 = vunpack.c.l.b16 %v949
  %v1006 = vunpack.c.l.b16 %v950
  %v1007 = vunpack.c.l.b16 %v951
  %v1008 = vunpack.c.l.b16 %v952
  %v1009 = vunpack.c.l.b16 %v953
  %v1010 = vunpack.c.l.b16 %v954
  %v1011 = vunpack.c.l.b16 %v955
  %v1012 = vunpack.c.l.b16 %v956
  %v1013 = vunpack.c.l.b16 %v957
  %v1014 = vunpack.c.l.b16 %v958
  %v1015 = vunpack.c.l.b16 %v959
  %v1016 = vunpack.c.l.b16 %v960
  %v1017 = vunpack.c.l.b16 %v961
  %v1018 = vunpack.c.l.b16 %v962
  %v1019 = vpack.c.b16 %v1004, %v1003
  %v1020 = vpack.c.b16 %v1006, %v1005
  %v1021 = vpack.c.b16 %v1008, %v1007
  %v1022 = vpack.c.b16 %v1010, %v1009
  %v1023 = vpack.c.b16 %v1012, %v1011
  %v1024 = vpack.c.b16 %v1014, %v1013
  %v1025 = vpack.c.b16 %v1016, %v1015
  %v1026 = vpack.c.b16 %v1018, %v1017
  %1035 = vmatprep.subr.bf16.mxu0 0
  %1036 = vmatpush1.bf16.msra.mxu0 %v1026
  %1037 = vmatprep.subr.bf16.mxu0 0
  %1038 = vmatpush1.bf16.msra.mxu0 %v1025
  %1039 = vmatprep.subr.bf16.mxu0 0
  %1040 = vmatpush1.bf16.msra.mxu0 %v1024
  %1041 = vmatprep.subr.bf16.mxu0 0
  %1042 = vmatpush1.bf16.msra.mxu0 %v1023
  %1043 = vmatprep.subr.bf16.mxu0 0
  %1044 = vmatpush1.bf16.msra.mxu0 %v1022
  %1045 = vmatprep.subr.bf16.mxu0 0
  %1046 = vmatpush1.bf16.msra.mxu0 %v1021
  %1047 = vmatprep.subr.bf16.mxu0 0
  %1048 = vmatpush1.bf16.msra.mxu0 %v1020
  %1049 = vmatprep.subr.bf16.mxu0 0
  %1050 = vmatpush1.bf16.msra.mxu0 %v1019
  %1051 = vmatprep.subr.bf16.mxu0 0
  %1052 = vmatpush2.bf16.msra.mxu0 0
  %1053 = vmatprep.subr.bf16.mxu0 0
  %1054 = vmatpush2.bf16.msra.mxu0 0
  %1055 = vmatprep.subr.bf16.mxu0 0
  %1056 = vmatpush2.bf16.msra.mxu0 0
  %1057 = vmatprep.subr.bf16.mxu0 0
  %1058 = vmatpush2.bf16.msra.mxu0 0
  %1059 = vmatprep.subr.bf16.mxu0 0
  %1060 = vmatpush2.bf16.msra.mxu0 0
  %1061 = vmatprep.subr.bf16.mxu0 0
  %1062 = vmatpush2.bf16.msra.mxu0 0
  %1063 = vmatprep.subr.bf16.mxu0 0
  %1064 = vmatpush2.bf16.msra.mxu0 0
  %1065 = vmatprep.subr.bf16.mxu0 0
  %1066 = vmatpush2.bf16.msra.mxu0 0
  %1067 = vmatprep.mubr.bf16.mxu0 0
  %1068 = vmatmul.mubr.bf16.gmra.mxu0 %v979
  %v1069 = vpop.f32.mrf.mxu0
  %v1070 = vadd.f32 0.0, %v1069
  %v1071 = vpop.f32.mrf.mxu0
  %v1072 = vpop.f32.mrf.mxu0
  %v1073 = vadd.f32 0.0, %v1072
  %v1074 = vpop.f32.mrf.mxu0
  %1075 = vmatprep.mubr.bf16.mxu0 0
  %1076 = vmatmul.mubr.bf16.gmra.mxu0 %v980
  %v1077 = vpop.f32.mrf.mxu0
  %v1078 = vadd.f32 0.0, %v1077
  %v1079 = vpop.f32.mrf.mxu0
  %v1080 = vpop.f32.mrf.mxu0
  %v1081 = vadd.f32 0.0, %v1080
  %v1082 = vpop.f32.mrf.mxu0
  %1083 = vmatprep.mubr.bf16.mxu0 0
  %1084 = vmatmul.mubr.bf16.gmra.mxu0 %v981
  %v1085 = vpop.f32.mrf.mxu0
  %v1086 = vadd.f32 0.0, %v1085
  %v1087 = vpop.f32.mrf.mxu0
  %v1088 = vpop.f32.mrf.mxu0
  %v1089 = vadd.f32 0.0, %v1088
  %v1090 = vpop.f32.mrf.mxu0
  %1091 = vmatprep.mubr.bf16.mxu0 0
  %1092 = vmatmul.mubr.bf16.gmra.mxu0 %v982
  %v1093 = vpop.f32.mrf.mxu0
  %v1094 = vadd.f32 0.0, %v1093
  %v1095 = vpop.f32.mrf.mxu0
  %v1096 = vpop.f32.mrf.mxu0
  %v1097 = vadd.f32 0.0, %v1096
  %v1098 = vpop.f32.mrf.mxu0
  %1099 = vdwg.mxu0
  %v1100 = vadd.f32 %v907, %v1070
  %v1101 = vadd.f32 %v910, %v1073
  %v1102 = vadd.f32 %v915, %v1078
  %v1103 = vadd.f32 %v918, %v1081
  %v1104 = vadd.f32 %v923, %v1086
  %v1105 = vadd.f32 %v926, %v1089
  %v1106 = vadd.f32 %v931, %v1094
  %v1107 = vadd.f32 %v934, %v1097
  %s1108 = scalar_lea.vmem [#allocation2], 12
  %v1109 = vld [vmem:[%s1108] sm:$0xf]
  %v1110 = vld [vmem:[%s1108 + $0x4] sm:$0xf]
  %v1111 = vld [vmem:[%s1108 + $0x8] sm:$0xf]
  %v1112 = vld [vmem:[%s1108 + $0xc] sm:$0xf]
  %v1113 = vld [vmem:[%s1108 + $0x10] sm:$0xf]
  %v1114 = vld [vmem:[%s1108 + $0x14] sm:$0xf]
  %v1115 = vld [vmem:[%s1108 + $0x18] sm:$0xf]
  %v1116 = vld [vmem:[%s1108 + $0x1c] sm:$0xf]
  %s1117 = scalar_lea.vmem %s3, 192
  %v1118 = vld [vmem:[%s1117] sm:$0xf]
  %v1119 = vld [vmem:[%s1117 + $0x4] sm:$0xf]
  %v1120 = vld [vmem:[%s1117 + $0x8] sm:$0xf]
  %v1121 = vld [vmem:[%s1117 + $0xc] sm:$0xf]
  %v1122 = vld [vmem:[%s1117 + $0x10] sm:$0xf]
  %v1123 = vld [vmem:[%s1117 + $0x14] sm:$0xf]
  %v1124 = vld [vmem:[%s1117 + $0x18] sm:$0xf]
  %v1125 = vld [vmem:[%s1117 + $0x1c] sm:$0xf]
  %v1126 = vld [vmem:[%s1117 + $0x20] sm:$0xf]
  %v1127 = vld [vmem:[%s1117 + $0x24] sm:$0xf]
  %v1128 = vld [vmem:[%s1117 + $0x28] sm:$0xf]
  %v1129 = vld [vmem:[%s1117 + $0x2c] sm:$0xf]
  %v1130 = vld [vmem:[%s1117 + $0x30] sm:$0xf]
  %v1131 = vld [vmem:[%s1117 + $0x34] sm:$0xf]
  %v1132 = vld [vmem:[%s1117 + $0x38] sm:$0xf]
  %v1133 = vld [vmem:[%s1117 + $0x3c] sm:$0xf]
  %v1142 = vunpack.c.l.b16 %v1109
  %v1143 = vunpack.c.l.b16 %v1110
  %v1144 = vunpack.c.l.b16 %v1111
  %v1145 = vunpack.c.l.b16 %v1112
  %v1146 = vunpack.c.l.b16 %v1113
  %v1147 = vunpack.c.l.b16 %v1114
  %v1148 = vunpack.c.l.b16 %v1115
  %v1149 = vunpack.c.l.b16 %v1116
  %v1150 = vpack.c.b16 %v1143, %v1142
  %v1151 = vpack.c.b16 %v1145, %v1144
  %v1152 = vpack.c.b16 %v1147, %v1146
  %v1153 = vpack.c.b16 %v1149, %v1148
  %v1174 = vunpack.c.l.b16 %v1118
  %v1175 = vunpack.c.l.b16 %v1119
  %v1176 = vunpack.c.l.b16 %v1120
  %v1177 = vunpack.c.l.b16 %v1121
  %v1178 = vunpack.c.l.b16 %v1122
  %v1179 = vunpack.c.l.b16 %v1123
  %v1180 = vunpack.c.l.b16 %v1124
  %v1181 = vunpack.c.l.b16 %v1125
  %v1182 = vunpack.c.l.b16 %v1126
  %v1183 = vunpack.c.l.b16 %v1127
  %v1184 = vunpack.c.l.b16 %v1128
  %v1185 = vunpack.c.l.b16 %v1129
  %v1186 = vunpack.c.l.b16 %v1130
  %v1187 = vunpack.c.l.b16 %v1131
  %v1188 = vunpack.c.l.b16 %v1132
  %v1189 = vunpack.c.l.b16 %v1133
  %v1190 = vpack.c.b16 %v1175, %v1174
  %v1191 = vpack.c.b16 %v1177, %v1176
  %v1192 = vpack.c.b16 %v1179, %v1178
  %v1193 = vpack.c.b16 %v1181, %v1180
  %v1194 = vpack.c.b16 %v1183, %v1182
  %v1195 = vpack.c.b16 %v1185, %v1184
  %v1196 = vpack.c.b16 %v1187, %v1186
  %v1197 = vpack.c.b16 %v1189, %v1188
  %1206 = vmatprep.subr.bf16.mxu0 0
  %1207 = vmatpush1.bf16.msra.mxu0 %v1197
  %1208 = vmatprep.subr.bf16.mxu0 0
  %1209 = vmatpush1.bf16.msra.mxu0 %v1196
  %1210 = vmatprep.subr.bf16.mxu0 0
  %1211 = vmatpush1.bf16.msra.mxu0 %v1195
  %1212 = vmatprep.subr.bf16.mxu0 0
  %1213 = vmatpush1.bf16.msra.mxu0 %v1194
  %1214 = vmatprep.subr.bf16.mxu0 0
  %1215 = vmatpush1.bf16.msra.mxu0 %v1193
  %1216 = vmatprep.subr.bf16.mxu0 0
  %1217 = vmatpush1.bf16.msra.mxu0 %v1192
  %1218 = vmatprep.subr.bf16.mxu0 0
  %1219 = vmatpush1.bf16.msra.mxu0 %v1191
  %1220 = vmatprep.subr.bf16.mxu0 0
  %1221 = vmatpush1.bf16.msra.mxu0 %v1190
  %1222 = vmatprep.subr.bf16.mxu0 0
  %1223 = vmatpush2.bf16.msra.mxu0 0
  %1224 = vmatprep.subr.bf16.mxu0 0
  %1225 = vmatpush2.bf16.msra.mxu0 0
  %1226 = vmatprep.subr.bf16.mxu0 0
  %1227 = vmatpush2.bf16.msra.mxu0 0
  %1228 = vmatprep.subr.bf16.mxu0 0
  %1229 = vmatpush2.bf16.msra.mxu0 0
  %1230 = vmatprep.subr.bf16.mxu0 0
  %1231 = vmatpush2.bf16.msra.mxu0 0
  %1232 = vmatprep.subr.bf16.mxu0 0
  %1233 = vmatpush2.bf16.msra.mxu0 0
  %1234 = vmatprep.subr.bf16.mxu0 0
  %1235 = vmatpush2.bf16.msra.mxu0 0
  %1236 = vmatprep.subr.bf16.mxu0 0
  %1237 = vmatpush2.bf16.msra.mxu0 0
  %1238 = vmatprep.mubr.bf16.mxu0 0
  %1239 = vmatmul.mubr.bf16.gmra.mxu0 %v1150
  %v1240 = vpop.f32.mrf.mxu0
  %v1241 = vadd.f32 0.0, %v1240
  %v1242 = vpop.f32.mrf.mxu0
  %v1243 = vpop.f32.mrf.mxu0
  %v1244 = vadd.f32 0.0, %v1243
  %v1245 = vpop.f32.mrf.mxu0
  %1246 = vmatprep.mubr.bf16.mxu0 0
  %1247 = vmatmul.mubr.bf16.gmra.mxu0 %v1151
  %v1248 = vpop.f32.mrf.mxu0
  %v1249 = vadd.f32 0.0, %v1248
  %v1250 = vpop.f32.mrf.mxu0
  %v1251 = vpop.f32.mrf.mxu0
  %v1252 = vadd.f32 0.0, %v1251
  %v1253 = vpop.f32.mrf.mxu0
  %1254 = vmatprep.mubr.bf16.mxu0 0
  %1255 = vmatmul.mubr.bf16.gmra.mxu0 %v1152
  %v1256 = vpop.f32.mrf.mxu0
  %v1257 = vadd.f32 0.0, %v1256
  %v1258 = vpop.f32.mrf.mxu0
  %v1259 = vpop.f32.mrf.mxu0
  %v1260 = vadd.f32 0.0, %v1259
  %v1261 = vpop.f32.mrf.mxu0
  %1262 = vmatprep.mubr.bf16.mxu0 0
  %1263 = vmatmul.mubr.bf16.gmra.mxu0 %v1153
  %v1264 = vpop.f32.mrf.mxu0
  %v1265 = vadd.f32 0.0, %v1264
  %v1266 = vpop.f32.mrf.mxu0
  %v1267 = vpop.f32.mrf.mxu0
  %v1268 = vadd.f32 0.0, %v1267
  %v1269 = vpop.f32.mrf.mxu0
  %1270 = vdwg.mxu0
  %v1271 = vadd.f32 %v1100, %v1241
  %v1272 = vadd.f32 %v1101, %v1244
  %v1273 = vadd.f32 %v1102, %v1249
  %v1274 = vadd.f32 %v1103, %v1252
  %v1275 = vadd.f32 %v1104, %v1257
  %v1276 = vadd.f32 %v1105, %v1260
  %v1277 = vadd.f32 %v1106, %v1265
  %v1278 = vadd.f32 %v1107, %v1268
  %s1279 = scalar_lea.vmem [#allocation2], 16
  %v1280 = vld [vmem:[%s1279] sm:$0xf]
  %v1281 = vld [vmem:[%s1279 + $0x4] sm:$0xf]
  %v1282 = vld [vmem:[%s1279 + $0x8] sm:$0xf]
  %v1283 = vld [vmem:[%s1279 + $0xc] sm:$0xf]
  %v1284 = vld [vmem:[%s1279 + $0x10] sm:$0xf]
  %v1285 = vld [vmem:[%s1279 + $0x14] sm:$0xf]
  %v1286 = vld [vmem:[%s1279 + $0x18] sm:$0xf]
  %v1287 = vld [vmem:[%s1279 + $0x1c] sm:$0xf]
  %s1288 = scalar_lea.vmem %s3, 256
  %v1289 = vld [vmem:[%s1288] sm:$0xf]
  %v1290 = vld [vmem:[%s1288 + $0x4] sm:$0xf]
  %v1291 = vld [vmem:[%s1288 + $0x8] sm:$0xf]
  %v1292 = vld [vmem:[%s1288 + $0xc] sm:$0xf]
  %v1293 = vld [vmem:[%s1288 + $0x10] sm:$0xf]
  %v1294 = vld [vmem:[%s1288 + $0x14] sm:$0xf]
  %v1295 = vld [vmem:[%s1288 + $0x18] sm:$0xf]
  %v1296 = vld [vmem:[%s1288 + $0x1c] sm:$0xf]
  %v1297 = vld [vmem:[%s1288 + $0x20] sm:$0xf]
  %v1298 = vld [vmem:[%s1288 + $0x24] sm:$0xf]
  %v1299 = vld [vmem:[%s1288 + $0x28] sm:$0xf]
  %v1300 = vld [vmem:[%s1288 + $0x2c] sm:$0xf]
  %v1301 = vld [vmem:[%s1288 + $0x30] sm:$0xf]
  %v1302 = vld [vmem:[%s1288 + $0x34] sm:$0xf]
  %v1303 = vld [vmem:[%s1288 + $0x38] sm:$0xf]
  %v1304 = vld [vmem:[%s1288 + $0x3c] sm:$0xf]
  %v1313 = vunpack.c.l.b16 %v1280
  %v1314 = vunpack.c.l.b16 %v1281
  %v1315 = vunpack.c.l.b16 %v1282
  %v1316 = vunpack.c.l.b16 %v1283
  %v1317 = vunpack.c.l.b16 %v1284
  %v1318 = vunpack.c.l.b16 %v1285
  %v1319 = vunpack.c.l.b16 %v1286
  %v1320 = vunpack.c.l.b16 %v1287
  %v1321 = vpack.c.b16 %v1314, %v1313
  %v1322 = vpack.c.b16 %v1316, %v1315
  %v1323 = vpack.c.b16 %v1318, %v1317
  %v1324 = vpack.c.b16 %v1320, %v1319
  %v1345 = vunpack.c.l.b16 %v1289
  %v1346 = vunpack.c.l.b16 %v1290
  %v1347 = vunpack.c.l.b16 %v1291
  %v1348 = vunpack.c.l.b16 %v1292
  %v1349 = vunpack.c.l.b16 %v1293
  %v1350 = vunpack.c.l.b16 %v1294
  %v1351 = vunpack.c.l.b16 %v1295
  %v1352 = vunpack.c.l.b16 %v1296
  %v1353 = vunpack.c.l.b16 %v1297
  %v1354 = vunpack.c.l.b16 %v1298
  %v1355 = vunpack.c.l.b16 %v1299
  %v1356 = vunpack.c.l.b16 %v1300
  %v1357 = vunpack.c.l.b16 %v1301
  %v1358 = vunpack.c.l.b16 %v1302
  %v1359 = vunpack.c.l.b16 %v1303
  %v1360 = vunpack.c.l.b16 %v1304
  %v1361 = vpack.c.b16 %v1346, %v1345
  %v1362 = vpack.c.b16 %v1348, %v1347
  %v1363 = vpack.c.b16 %v1350, %v1349
  %v1364 = vpack.c.b16 %v1352, %v1351
  %v1365 = vpack.c.b16 %v1354, %v1353
  %v1366 = vpack.c.b16 %v1356, %v1355
  %v1367 = vpack.c.b16 %v1358, %v1357
  %v1368 = vpack.c.b16 %v1360, %v1359
  %1377 = vmatprep.subr.bf16.mxu0 0
  %1378 = vmatpush1.bf16.msra.mxu0 %v1368
  %1379 = vmatprep.subr.bf16.mxu0 0
  %1380 = vmatpush1.bf16.msra.mxu0 %v1367
  %1381 = vmatprep.subr.bf16.mxu0 0
  %1382 = vmatpush1.bf16.msra.mxu0 %v1366
  %1383 = vmatprep.subr.bf16.mxu0 0
  %1384 = vmatpush1.bf16.msra.mxu0 %v1365
  %1385 = vmatprep.subr.bf16.mxu0 0
  %1386 = vmatpush1.bf16.msra.mxu0 %v1364
  %1387 = vmatprep.subr.bf16.mxu0 0
  %1388 = vmatpush1.bf16.msra.mxu0 %v1363
  %1389 = vmatprep.subr.bf16.mxu0 0
  %1390 = vmatpush1.bf16.msra.mxu0 %v1362
  %1391 = vmatprep.subr.bf16.mxu0 0
  %1392 = vmatpush1.bf16.msra.mxu0 %v1361
  %1393 = vmatprep.subr.bf16.mxu0 0
  %1394 = vmatpush2.bf16.msra.mxu0 0
  %1395 = vmatprep.subr.bf16.mxu0 0
  %1396 = vmatpush2.bf16.msra.mxu0 0
  %1397 = vmatprep.subr.bf16.mxu0 0
  %1398 = vmatpush2.bf16.msra.mxu0 0
  %1399 = vmatprep.subr.bf16.mxu0 0
  %1400 = vmatpush2.bf16.msra.mxu0 0
  %1401 = vmatprep.subr.bf16.mxu0 0
  %1402 = vmatpush2.bf16.msra.mxu0 0
  %1403 = vmatprep.subr.bf16.mxu0 0
  %1404 = vmatpush2.bf16.msra.mxu0 0
  %1405 = vmatprep.subr.bf16.mxu0 0
  %1406 = vmatpush2.bf16.msra.mxu0 0
  %1407 = vmatprep.subr.bf16.mxu0 0
  %1408 = vmatpush2.bf16.msra.mxu0 0
  %1409 = vmatprep.mubr.bf16.mxu0 0
  %1410 = vmatmul.mubr.bf16.gmra.mxu0 %v1321
  %v1411 = vpop.f32.mrf.mxu0
  %v1412 = vadd.f32 0.0, %v1411
  %v1413 = vpop.f32.mrf.mxu0
  %v1414 = vpop.f32.mrf.mxu0
  %v1415 = vadd.f32 0.0, %v1414
  %v1416 = vpop.f32.mrf.mxu0
  %1417 = vmatprep.mubr.bf16.mxu0 0
  %1418 = vmatmul.mubr.bf16.gmra.mxu0 %v1322
  %v1419 = vpop.f32.mrf.mxu0
  %v1420 = vadd.f32 0.0, %v1419
  %v1421 = vpop.f32.mrf.mxu0
  %v1422 = vpop.f32.mrf.mxu0
  %v1423 = vadd.f32 0.0, %v1422
  %v1424 = vpop.f32.mrf.mxu0
  %1425 = vmatprep.mubr.bf16.mxu0 0
  %1426 = vmatmul.mubr.bf16.gmra.mxu0 %v1323
  %v1427 = vpop.f32.mrf.mxu0
  %v1428 = vadd.f32 0.0, %v1427
  %v1429 = vpop.f32.mrf.mxu0
  %v1430 = vpop.f32.mrf.mxu0
  %v1431 = vadd.f32 0.0, %v1430
  %v1432 = vpop.f32.mrf.mxu0
  %1433 = vmatprep.mubr.bf16.mxu0 0
  %1434 = vmatmul.mubr.bf16.gmra.mxu0 %v1324
  %v1435 = vpop.f32.mrf.mxu0
  %v1436 = vadd.f32 0.0, %v1435
  %v1437 = vpop.f32.mrf.mxu0
  %v1438 = vpop.f32.mrf.mxu0
  %v1439 = vadd.f32 0.0, %v1438
  %v1440 = vpop.f32.mrf.mxu0
  %1441 = vdwg.mxu0
  %v1442 = vadd.f32 %v1271, %v1412
  %v1443 = vadd.f32 %v1272, %v1415
  %v1444 = vadd.f32 %v1273, %v1420
  %v1445 = vadd.f32 %v1274, %v1423
  %v1446 = vadd.f32 %v1275, %v1428
  %v1447 = vadd.f32 %v1276, %v1431
  %v1448 = vadd.f32 %v1277, %v1436
  %v1449 = vadd.f32 %v1278, %v1439
  %1450 = vrot.lane.b32.xlu0 %v1442, 64
  %v1451 = vpop.permute.xlu0 %1450
  %1452 = vrot.lane.b32.xlu0 %v1443, 64
  %v1453 = vpop.permute.xlu0 %1452
  %1454 = vrot.lane.b32.xlu0 %v1444, 64
  %v1455 = vpop.permute.xlu0 %1454
  %1456 = vrot.lane.b32.xlu0 %v1445, 64
  %v1457 = vpop.permute.xlu0 %1456
  %1458 = vrot.lane.b32.xlu0 %v1446, 64
  %v1459 = vpop.permute.xlu0 %1458
  %1460 = vrot.lane.b32.xlu0 %v1447, 64
  %v1461 = vpop.permute.xlu0 %1460
  %1462 = vrot.lane.b32.xlu0 %v1448, 64
  %v1463 = vpop.permute.xlu0 %1462
  %1464 = vrot.lane.b32.xlu0 %v1449, 64
  %v1465 = vpop.permute.xlu0 %1464
  %v1466 = vmax.f32 %v1442, %v1451
  %v1467 = vmax.f32 %v1443, %v1453
  %v1468 = vmax.f32 %v1444, %v1455
  %v1469 = vmax.f32 %v1445, %v1457
  %v1470 = vmax.f32 %v1446, %v1459
  %v1471 = vmax.f32 %v1447, %v1461
  %v1472 = vmax.f32 %v1448, %v1463
  %v1473 = vmax.f32 %v1449, %v1465
  %v1474 = vmax.f32 %v1466, %v1467
  %v1475 = vmax.f32 %v1468, %v1469
  %v1476 = vmax.f32 %v1470, %v1471
  %v1477 = vmax.f32 %v1472, %v1473
  %v1478 = vld [vmem:[%s4] sm:$0x1]
  %v1480 = vlaneseq
  %v1481 = vshrl.u32 %v1480, 7
  %v1482 = vsub.s32 0, %v1481
  %v1483 = vrot.slane %v1478, %v1482
  %v1485 = vadd.f32 %v1474, %v1483
  %v1486 = vadd.f32 %v1475, %v1483
  %v1487 = vadd.f32 %v1476, %v1483
  %v1488 = vadd.f32 %v1477, %v1483
  %v1489 = vmax.f32 %v1485, 0.0
  %v1490 = vmax.f32 %v1486, 0.0
  %v1491 = vmax.f32 %v1487, 0.0
  %v1492 = vmax.f32 %v1488, 0.0
  %v1493 = vpack.c.bf16 %v1489, %v1489
  %v1494 = vpack.c.bf16 %v1490, %v1490
  %v1495 = vpack.c.bf16 %v1491, %v1491
  %v1496 = vpack.c.bf16 %v1492, %v1492
  %v1497 = vld [vmem:[%s5] sm:$0xf]
  %v1498 = vld [vmem:[%s5 + $0x4] sm:$0xf]
  %v1499 = vld [vmem:[%s5 + $0x8] sm:$0xf]
  %v1500 = vld [vmem:[%s5 + $0xc] sm:$0xf]
  %v1501 = vld [vmem:[%s5 + $0x10] sm:$0xf]
  %v1502 = vld [vmem:[%s5 + $0x14] sm:$0xf]
  %v1503 = vld [vmem:[%s5 + $0x18] sm:$0xf]
  %v1504 = vld [vmem:[%s5 + $0x1c] sm:$0xf]
  %v1505 = vld [vmem:[%s5 + $0x20] sm:$0xf]
  %v1506 = vld [vmem:[%s5 + $0x24] sm:$0xf]
  %v1507 = vld [vmem:[%s5 + $0x28] sm:$0xf]
  %v1508 = vld [vmem:[%s5 + $0x2c] sm:$0xf]
  %v1509 = vld [vmem:[%s5 + $0x30] sm:$0xf]
  %v1510 = vld [vmem:[%s5 + $0x34] sm:$0xf]
  %v1511 = vld [vmem:[%s5 + $0x38] sm:$0xf]
  %v1512 = vld [vmem:[%s5 + $0x3c] sm:$0xf]
  %s1513 = scalar_lea.vmem %s5, 64
  %v1514 = vld [vmem:[%s1513] sm:$0xf]
  %v1515 = vld [vmem:[%s1513 + $0x4] sm:$0xf]
  %v1516 = vld [vmem:[%s1513 + $0x8] sm:$0xf]
  %v1517 = vld [vmem:[%s1513 + $0xc] sm:$0xf]
  %v1518 = vld [vmem:[%s1513 + $0x10] sm:$0xf]
  %v1519 = vld [vmem:[%s1513 + $0x14] sm:$0xf]
  %v1520 = vld [vmem:[%s1513 + $0x18] sm:$0xf]
  %v1521 = vld [vmem:[%s1513 + $0x1c] sm:$0xf]
  %v1522 = vld [vmem:[%s1513 + $0x20] sm:$0xf]
  %v1523 = vld [vmem:[%s1513 + $0x24] sm:$0xf]
  %v1524 = vld [vmem:[%s1513 + $0x28] sm:$0xf]
  %v1525 = vld [vmem:[%s1513 + $0x2c] sm:$0xf]
  %v1526 = vld [vmem:[%s1513 + $0x30] sm:$0xf]
  %v1527 = vld [vmem:[%s1513 + $0x34] sm:$0xf]
  %v1528 = vld [vmem:[%s1513 + $0x38] sm:$0xf]
  %v1529 = vld [vmem:[%s1513 + $0x3c] sm:$0xf]
  %v1546 = vunpack.c.l.b16 %v1514
  %v1547 = vunpack.c.l.b16 %v1515
  %v1548 = vunpack.c.l.b16 %v1516
  %v1549 = vunpack.c.l.b16 %v1517
  %v1550 = vunpack.c.l.b16 %v1518
  %v1551 = vunpack.c.l.b16 %v1519
  %v1552 = vunpack.c.l.b16 %v1520
  %v1553 = vunpack.c.l.b16 %v1521
  %v1554 = vunpack.c.l.b16 %v1522
  %v1555 = vunpack.c.l.b16 %v1523
  %v1556 = vunpack.c.l.b16 %v1524
  %v1557 = vunpack.c.l.b16 %v1525
  %v1558 = vunpack.c.l.b16 %v1526
  %v1559 = vunpack.c.l.b16 %v1527
  %v1560 = vunpack.c.l.b16 %v1528
  %v1561 = vunpack.c.l.b16 %v1529
  %v1562 = vpack.c.b16 %v1547, %v1546
  %v1563 = vpack.c.b16 %v1549, %v1548
  %v1564 = vpack.c.b16 %v1551, %v1550
  %v1565 = vpack.c.b16 %v1553, %v1552
  %v1566 = vpack.c.b16 %v1555, %v1554
  %v1567 = vpack.c.b16 %v1557, %v1556
  %v1568 = vpack.c.b16 %v1559, %v1558
  %v1569 = vpack.c.b16 %v1561, %v1560
  %1578 = vmatprep.subr.bf16.mxu0 0
  %1579 = vmatpush1.bf16.msra.mxu0 %v1569
  %1580 = vmatprep.subr.bf16.mxu0 0
  %1581 = vmatpush1.bf16.msra.mxu0 %v1568
  %1582 = vmatprep.subr.bf16.mxu0 0
  %1583 = vmatpush1.bf16.msra.mxu0 %v1567
  %1584 = vmatprep.subr.bf16.mxu0 0
  %1585 = vmatpush1.bf16.msra.mxu0 %v1566
  %1586 = vmatprep.subr.bf16.mxu0 0
  %1587 = vmatpush1.bf16.msra.mxu0 %v1565
  %1588 = vmatprep.subr.bf16.mxu0 0
  %1589 = vmatpush1.bf16.msra.mxu0 %v1564
  %1590 = vmatprep.subr.bf16.mxu0 0
  %1591 = vmatpush1.bf16.msra.mxu0 %v1563
  %1592 = vmatprep.subr.bf16.mxu0 0
  %1593 = vmatpush1.bf16.msra.mxu0 %v1562
  %1594 = vmatprep.subr.bf16.mxu0 0
  %1595 = vmatpush2.bf16.msra.mxu0 0
  %1596 = vmatprep.subr.bf16.mxu0 0
  %1597 = vmatpush2.bf16.msra.mxu0 0
  %1598 = vmatprep.subr.bf16.mxu0 0
  %1599 = vmatpush2.bf16.msra.mxu0 0
  %1600 = vmatprep.subr.bf16.mxu0 0
  %1601 = vmatpush2.bf16.msra.mxu0 0
  %1602 = vmatprep.subr.bf16.mxu0 0
  %1603 = vmatpush2.bf16.msra.mxu0 0
  %1604 = vmatprep.subr.bf16.mxu0 0
  %1605 = vmatpush2.bf16.msra.mxu0 0
  %1606 = vmatprep.subr.bf16.mxu0 0
  %1607 = vmatpush2.bf16.msra.mxu0 0
  %1608 = vmatprep.subr.bf16.mxu0 0
  %1609 = vmatpush2.bf16.msra.mxu0 0
  %1610 = vmatprep.mubr.bf16.mxu0 0
  %1611 = vmatmul.mubr.bf16.gmra.mxu0 %v1494
  %v1612 = vpop.f32.mrf.mxu0
  %v1613 = vadd.f32 0.0, %v1612
  %v1614 = vpop.f32.mrf.mxu0
  %v1615 = vpop.f32.mrf.mxu0
  %v1616 = vpop.f32.mrf.mxu0
  %1617 = vdwg.mxu0
  %v1634 = vunpack.c.l.b16 %v1497
  %v1635 = vunpack.c.l.b16 %v1498
  %v1636 = vunpack.c.l.b16 %v1499
  %v1637 = vunpack.c.l.b16 %v1500
  %v1638 = vunpack.c.l.b16 %v1501
  %v1639 = vunpack.c.l.b16 %v1502
  %v1640 = vunpack.c.l.b16 %v1503
  %v1641 = vunpack.c.l.b16 %v1504
  %v1642 = vunpack.c.l.b16 %v1505
  %v1643 = vunpack.c.l.b16 %v1506
  %v1644 = vunpack.c.l.b16 %v1507
  %v1645 = vunpack.c.l.b16 %v1508
  %v1646 = vunpack.c.l.b16 %v1509
  %v1647 = vunpack.c.l.b16 %v1510
  %v1648 = vunpack.c.l.b16 %v1511
  %v1649 = vunpack.c.l.b16 %v1512
  %v1650 = vpack.c.b16 %v1635, %v1634
  %v1651 = vpack.c.b16 %v1637, %v1636
  %v1652 = vpack.c.b16 %v1639, %v1638
  %v1653 = vpack.c.b16 %v1641, %v1640
  %v1654 = vpack.c.b16 %v1643, %v1642
  %v1655 = vpack.c.b16 %v1645, %v1644
  %v1656 = vpack.c.b16 %v1647, %v1646
  %v1657 = vpack.c.b16 %v1649, %v1648
  %1666 = vmatprep.subr.bf16.mxu0 0
  %1667 = vmatpush1.bf16.msra.mxu0 %v1657
  %1668 = vmatprep.subr.bf16.mxu0 0
  %1669 = vmatpush1.bf16.msra.mxu0 %v1656
  %1670 = vmatprep.subr.bf16.mxu0 0
  %1671 = vmatpush1.bf16.msra.mxu0 %v1655
  %1672 = vmatprep.subr.bf16.mxu0 0
  %1673 = vmatpush1.bf16.msra.mxu0 %v1654
  %1674 = vmatprep.subr.bf16.mxu0 0
  %1675 = vmatpush1.bf16.msra.mxu0 %v1653
  %1676 = vmatprep.subr.bf16.mxu0 0
  %1677 = vmatpush1.bf16.msra.mxu0 %v1652
  %1678 = vmatprep.subr.bf16.mxu0 0
  %1679 = vmatpush1.bf16.msra.mxu0 %v1651
  %1680 = vmatprep.subr.bf16.mxu0 0
  %1681 = vmatpush1.bf16.msra.mxu0 %v1650
  %1682 = vmatprep.subr.bf16.mxu0 0
  %1683 = vmatpush2.bf16.msra.mxu0 0
  %1684 = vmatprep.subr.bf16.mxu0 0
  %1685 = vmatpush2.bf16.msra.mxu0 0
  %1686 = vmatprep.subr.bf16.mxu0 0
  %1687 = vmatpush2.bf16.msra.mxu0 0
  %1688 = vmatprep.subr.bf16.mxu0 0
  %1689 = vmatpush2.bf16.msra.mxu0 0
  %1690 = vmatprep.subr.bf16.mxu0 0
  %1691 = vmatpush2.bf16.msra.mxu0 0
  %1692 = vmatprep.subr.bf16.mxu0 0
  %1693 = vmatpush2.bf16.msra.mxu0 0
  %1694 = vmatprep.subr.bf16.mxu0 0
  %1695 = vmatpush2.bf16.msra.mxu0 0
  %1696 = vmatprep.subr.bf16.mxu0 0
  %1697 = vmatpush2.bf16.msra.mxu0 0
  %1698 = vmatprep.mubr.bf16.mxu0 0
  %1699 = vmatmul.mubr.bf16.gmra.mxu0 %v1493
  %v1700 = vpop.f32.mrf.mxu0
  %v1701 = vadd.f32 %v1613, %v1700
  %v1702 = vpop.f32.mrf.mxu0
  %v1703 = vpop.f32.mrf.mxu0
  %v1704 = vpop.f32.mrf.mxu0
  %1705 = vdwg.mxu0
  %s1706 = scalar_lea.vmem %s5, 128
  %v1707 = vld [vmem:[%s1706] sm:$0xf]
  %v1708 = vld [vmem:[%s1706 + $0x4] sm:$0xf]
  %v1709 = vld [vmem:[%s1706 + $0x8] sm:$0xf]
  %v1710 = vld [vmem:[%s1706 + $0xc] sm:$0xf]
  %v1711 = vld [vmem:[%s1706 + $0x10] sm:$0xf]
  %v1712 = vld [vmem:[%s1706 + $0x14] sm:$0xf]
  %v1713 = vld [vmem:[%s1706 + $0x18] sm:$0xf]
  %v1714 = vld [vmem:[%s1706 + $0x1c] sm:$0xf]
  %v1715 = vld [vmem:[%s1706 + $0x20] sm:$0xf]
  %v1716 = vld [vmem:[%s1706 + $0x24] sm:$0xf]
  %v1717 = vld [vmem:[%s1706 + $0x28] sm:$0xf]
  %v1718 = vld [vmem:[%s1706 + $0x2c] sm:$0xf]
  %v1719 = vld [vmem:[%s1706 + $0x30] sm:$0xf]
  %v1720 = vld [vmem:[%s1706 + $0x34] sm:$0xf]
  %v1721 = vld [vmem:[%s1706 + $0x38] sm:$0xf]
  %v1722 = vld [vmem:[%s1706 + $0x3c] sm:$0xf]
  %v1739 = vunpack.c.l.b16 %v1707
  %v1740 = vunpack.c.l.b16 %v1708
  %v1741 = vunpack.c.l.b16 %v1709
  %v1742 = vunpack.c.l.b16 %v1710
  %v1743 = vunpack.c.l.b16 %v1711
  %v1744 = vunpack.c.l.b16 %v1712
  %v1745 = vunpack.c.l.b16 %v1713
  %v1746 = vunpack.c.l.b16 %v1714
  %v1747 = vunpack.c.l.b16 %v1715
  %v1748 = vunpack.c.l.b16 %v1716
  %v1749 = vunpack.c.l.b16 %v1717
  %v1750 = vunpack.c.l.b16 %v1718
  %v1751 = vunpack.c.l.b16 %v1719
  %v1752 = vunpack.c.l.b16 %v1720
  %v1753 = vunpack.c.l.b16 %v1721
  %v1754 = vunpack.c.l.b16 %v1722
  %v1755 = vpack.c.b16 %v1740, %v1739
  %v1756 = vpack.c.b16 %v1742, %v1741
  %v1757 = vpack.c.b16 %v1744, %v1743
  %v1758 = vpack.c.b16 %v1746, %v1745
  %v1759 = vpack.c.b16 %v1748, %v1747
  %v1760 = vpack.c.b16 %v1750, %v1749
  %v1761 = vpack.c.b16 %v1752, %v1751
  %v1762 = vpack.c.b16 %v1754, %v1753
  %1771 = vmatprep.subr.bf16.mxu0 0
  %1772 = vmatpush1.bf16.msra.mxu0 %v1762
  %1773 = vmatprep.subr.bf16.mxu0 0
  %1774 = vmatpush1.bf16.msra.mxu0 %v1761
  %1775 = vmatprep.subr.bf16.mxu0 0
  %1776 = vmatpush1.bf16.msra.mxu0 %v1760
  %1777 = vmatprep.subr.bf16.mxu0 0
  %1778 = vmatpush1.bf16.msra.mxu0 %v1759
  %1779 = vmatprep.subr.bf16.mxu0 0
  %1780 = vmatpush1.bf16.msra.mxu0 %v1758
  %1781 = vmatprep.subr.bf16.mxu0 0
  %1782 = vmatpush1.bf16.msra.mxu0 %v1757
  %1783 = vmatprep.subr.bf16.mxu0 0
  %1784 = vmatpush1.bf16.msra.mxu0 %v1756
  %1785 = vmatprep.subr.bf16.mxu0 0
  %1786 = vmatpush1.bf16.msra.mxu0 %v1755
  %1787 = vmatprep.subr.bf16.mxu0 0
  %1788 = vmatpush2.bf16.msra.mxu0 0
  %1789 = vmatprep.subr.bf16.mxu0 0
  %1790 = vmatpush2.bf16.msra.mxu0 0
  %1791 = vmatprep.subr.bf16.mxu0 0
  %1792 = vmatpush2.bf16.msra.mxu0 0
  %1793 = vmatprep.subr.bf16.mxu0 0
  %1794 = vmatpush2.bf16.msra.mxu0 0
  %1795 = vmatprep.subr.bf16.mxu0 0
  %1796 = vmatpush2.bf16.msra.mxu0 0
  %1797 = vmatprep.subr.bf16.mxu0 0
  %1798 = vmatpush2.bf16.msra.mxu0 0
  %1799 = vmatprep.subr.bf16.mxu0 0
  %1800 = vmatpush2.bf16.msra.mxu0 0
  %1801 = vmatprep.subr.bf16.mxu0 0
  %1802 = vmatpush2.bf16.msra.mxu0 0
  %1803 = vmatprep.mubr.bf16.mxu0 0
  %1804 = vmatmul.mubr.bf16.gmra.mxu0 %v1495
  %v1805 = vpop.f32.mrf.mxu0
  %v1806 = vadd.f32 0.0, %v1805
  %v1807 = vpop.f32.mrf.mxu0
  %v1808 = vpop.f32.mrf.mxu0
  %v1809 = vpop.f32.mrf.mxu0
  %1810 = vdwg.mxu0
  %v1811 = vadd.f32 %v1701, %v1806
  %s1812 = scalar_lea.vmem %s5, 192
  %v1813 = vld [vmem:[%s1812] sm:$0xf]
  %v1814 = vld [vmem:[%s1812 + $0x4] sm:$0xf]
  %v1815 = vld [vmem:[%s1812 + $0x8] sm:$0xf]
  %v1816 = vld [vmem:[%s1812 + $0xc] sm:$0xf]
  %v1817 = vld [vmem:[%s1812 + $0x10] sm:$0xf]
  %v1818 = vld [vmem:[%s1812 + $0x14] sm:$0xf]
  %v1819 = vld [vmem:[%s1812 + $0x18] sm:$0xf]
  %v1820 = vld [vmem:[%s1812 + $0x1c] sm:$0xf]
  %v1821 = vld [vmem:[%s1812 + $0x20] sm:$0xf]
  %v1822 = vld [vmem:[%s1812 + $0x24] sm:$0xf]
  %v1823 = vld [vmem:[%s1812 + $0x28] sm:$0xf]
  %v1824 = vld [vmem:[%s1812 + $0x2c] sm:$0xf]
  %v1825 = vld [vmem:[%s1812 + $0x30] sm:$0xf]
  %v1826 = vld [vmem:[%s1812 + $0x34] sm:$0xf]
  %v1827 = vld [vmem:[%s1812 + $0x38] sm:$0xf]
  %v1828 = vld [vmem:[%s1812 + $0x3c] sm:$0xf]
  %v1845 = vunpack.c.l.b16 %v1813
  %v1846 = vunpack.c.l.b16 %v1814
  %v1847 = vunpack.c.l.b16 %v1815
  %v1848 = vunpack.c.l.b16 %v1816
  %v1849 = vunpack.c.l.b16 %v1817
  %v1850 = vunpack.c.l.b16 %v1818
  %v1851 = vunpack.c.l.b16 %v1819
  %v1852 = vunpack.c.l.b16 %v1820
  %v1853 = vunpack.c.l.b16 %v1821
  %v1854 = vunpack.c.l.b16 %v1822
  %v1855 = vunpack.c.l.b16 %v1823
  %v1856 = vunpack.c.l.b16 %v1824
  %v1857 = vunpack.c.l.b16 %v1825
  %v1858 = vunpack.c.l.b16 %v1826
  %v1859 = vunpack.c.l.b16 %v1827
  %v1860 = vunpack.c.l.b16 %v1828
  %v1861 = vpack.c.b16 %v1846, %v1845
  %v1862 = vpack.c.b16 %v1848, %v1847
  %v1863 = vpack.c.b16 %v1850, %v1849
  %v1864 = vpack.c.b16 %v1852, %v1851
  %v1865 = vpack.c.b16 %v1854, %v1853
  %v1866 = vpack.c.b16 %v1856, %v1855
  %v1867 = vpack.c.b16 %v1858, %v1857
  %v1868 = vpack.c.b16 %v1860, %v1859
  %1877 = vmatprep.subr.bf16.mxu0 0
  %1878 = vmatpush1.bf16.msra.mxu0 %v1868
  %1879 = vmatprep.subr.bf16.mxu0 0
  %1880 = vmatpush1.bf16.msra.mxu0 %v1867
  %1881 = vmatprep.subr.bf16.mxu0 0
  %1882 = vmatpush1.bf16.msra.mxu0 %v1866
  %1883 = vmatprep.subr.bf16.mxu0 0
  %1884 = vmatpush1.bf16.msra.mxu0 %v1865
  %1885 = vmatprep.subr.bf16.mxu0 0
  %1886 = vmatpush1.bf16.msra.mxu0 %v1864
  %1887 = vmatprep.subr.bf16.mxu0 0
  %1888 = vmatpush1.bf16.msra.mxu0 %v1863
  %1889 = vmatprep.subr.bf16.mxu0 0
  %1890 = vmatpush1.bf16.msra.mxu0 %v1862
  %1891 = vmatprep.subr.bf16.mxu0 0
  %1892 = vmatpush1.bf16.msra.mxu0 %v1861
  %1893 = vmatprep.subr.bf16.mxu0 0
  %1894 = vmatpush2.bf16.msra.mxu0 0
  %1895 = vmatprep.subr.bf16.mxu0 0
  %1896 = vmatpush2.bf16.msra.mxu0 0
  %1897 = vmatprep.subr.bf16.mxu0 0
  %1898 = vmatpush2.bf16.msra.mxu0 0
  %1899 = vmatprep.subr.bf16.mxu0 0
  %1900 = vmatpush2.bf16.msra.mxu0 0
  %1901 = vmatprep.subr.bf16.mxu0 0
  %1902 = vmatpush2.bf16.msra.mxu0 0
  %1903 = vmatprep.subr.bf16.mxu0 0
  %1904 = vmatpush2.bf16.msra.mxu0 0
  %1905 = vmatprep.subr.bf16.mxu0 0
  %1906 = vmatpush2.bf16.msra.mxu0 0
  %1907 = vmatprep.subr.bf16.mxu0 0
  %1908 = vmatpush2.bf16.msra.mxu0 0
  %1909 = vmatprep.mubr.bf16.mxu0 0
  %1910 = vmatmul.mubr.bf16.gmra.mxu0 %v1496
  %v1911 = vpop.f32.mrf.mxu0
  %v1912 = vadd.f32 0.0, %v1911
  %v1913 = vpop.f32.mrf.mxu0
  %v1914 = vpop.f32.mrf.mxu0
  %v1915 = vpop.f32.mrf.mxu0
  %1916 = vdwg.mxu0
  %v1917 = vadd.f32 %v1811, %v1912
  %v1918 = vmax.f32 %v1917, 0.0
  %v1919 = vpack.c.bf16 %v1918, %v1918
  %v1920 = vld [vmem:[%s6] sm:$0xf]
  %v1921 = vld [vmem:[%s6 + $0x4] sm:$0xf]
  %v1922 = vld [vmem:[%s6 + $0x8] sm:$0xf]
  %v1923 = vld [vmem:[%s6 + $0xc] sm:$0xf]
  %v1924 = vld [vmem:[%s6 + $0x10] sm:$0xf]
  %v1925 = vld [vmem:[%s6 + $0x14] sm:$0xf]
  %v1926 = vld [vmem:[%s6 + $0x18] sm:$0xf]
  %v1927 = vld [vmem:[%s6 + $0x1c] sm:$0xf]
  %v1928 = vld [vmem:[%s6 + $0x20] sm:$0xf]
  %v1929 = vld [vmem:[%s6 + $0x24] sm:$0xf]
  %v1930 = vld [vmem:[%s6 + $0x28] sm:$0xf]
  %v1931 = vld [vmem:[%s6 + $0x2c] sm:$0xf]
  %v1932 = vld [vmem:[%s6 + $0x30] sm:$0xf]
  %v1933 = vld [vmem:[%s6 + $0x34] sm:$0xf]
  %v1934 = vld [vmem:[%s6 + $0x38] sm:$0xf]
  %v1935 = vld [vmem:[%s6 + $0x3c] sm:$0xf]
  %v1952 = vunpack.c.l.b16 %v1920
  %v1953 = vunpack.c.l.b16 %v1921
  %v1954 = vunpack.c.l.b16 %v1922
  %v1955 = vunpack.c.l.b16 %v1923
  %v1956 = vunpack.c.l.b16 %v1924
  %v1957 = vunpack.c.l.b16 %v1925
  %v1958 = vunpack.c.l.b16 %v1926
  %v1959 = vunpack.c.l.b16 %v1927
  %v1960 = vunpack.c.l.b16 %v1928
  %v1961 = vunpack.c.l.b16 %v1929
  %v1962 = vunpack.c.l.b16 %v1930
  %v1963 = vunpack.c.l.b16 %v1931
  %v1964 = vunpack.c.l.b16 %v1932
  %v1965 = vunpack.c.l.b16 %v1933
  %v1966 = vunpack.c.l.b16 %v1934
  %v1967 = vunpack.c.l.b16 %v1935
  %v1968 = vpack.c.b16 %v1953, %v1952
  %v1969 = vpack.c.b16 %v1955, %v1954
  %v1970 = vpack.c.b16 %v1957, %v1956
  %v1971 = vpack.c.b16 %v1959, %v1958
  %v1972 = vpack.c.b16 %v1961, %v1960
  %v1973 = vpack.c.b16 %v1963, %v1962
  %v1974 = vpack.c.b16 %v1965, %v1964
  %v1975 = vpack.c.b16 %v1967, %v1966
  %1984 = vmatprep.subr.bf16.mxu0 0
  %1985 = vmatpush1.bf16.msra.mxu0 %v1975
  %1986 = vmatprep.subr.bf16.mxu0 0
  %1987 = vmatpush1.bf16.msra.mxu0 %v1974
  %1988 = vmatprep.subr.bf16.mxu0 0
  %1989 = vmatpush1.bf16.msra.mxu0 %v1973
  %1990 = vmatprep.subr.bf16.mxu0 0
  %1991 = vmatpush1.bf16.msra.mxu0 %v1972
  %1992 = vmatprep.subr.bf16.mxu0 0
  %1993 = vmatpush1.bf16.msra.mxu0 %v1971
  %1994 = vmatprep.subr.bf16.mxu0 0
  %1995 = vmatpush1.bf16.msra.mxu0 %v1970
  %1996 = vmatprep.subr.bf16.mxu0 0
  %1997 = vmatpush1.bf16.msra.mxu0 %v1969
  %1998 = vmatprep.subr.bf16.mxu0 0
  %1999 = vmatpush1.bf16.msra.mxu0 %v1968
  %2000 = vmatprep.subr.bf16.mxu0 0
  %2001 = vmatpush2.bf16.msra.mxu0 0
  %2002 = vmatprep.subr.bf16.mxu0 0
  %2003 = vmatpush2.bf16.msra.mxu0 0
  %2004 = vmatprep.subr.bf16.mxu0 0
  %2005 = vmatpush2.bf16.msra.mxu0 0
  %2006 = vmatprep.subr.bf16.mxu0 0
  %2007 = vmatpush2.bf16.msra.mxu0 0
  %2008 = vmatprep.subr.bf16.mxu0 0
  %2009 = vmatpush2.bf16.msra.mxu0 0
  %2010 = vmatprep.subr.bf16.mxu0 0
  %2011 = vmatpush2.bf16.msra.mxu0 0
  %2012 = vmatprep.subr.bf16.mxu0 0
  %2013 = vmatpush2.bf16.msra.mxu0 0
  %2014 = vmatprep.subr.bf16.mxu0 0
  %2015 = vmatpush2.bf16.msra.mxu0 0
  %2016 = vmatprep.mubr.bf16.mxu0 0
  %2017 = vmatmul.mubr.bf16.gmra.mxu0 %v1919
  %v2018 = vpop.f32.mrf.mxu0
  %v2019 = vadd.f32 0.0, %v2018
  %v2020 = vpop.f32.mrf.mxu0
  %v2021 = vpop.f32.mrf.mxu0
  %v2022 = vpop.f32.mrf.mxu0
  %2023 = vdwg.mxu0
  %v2024 = vmax.f32 %v2019, 0.0
  %v2025 = vpack.c.bf16 %v2024, %v2024
  %v2026 = vld [vmem:[%s7] sm:$0xf]
  %v2027 = vld [vmem:[%s7 + $0x4] sm:$0xf]
  %v2028 = vld [vmem:[%s7 + $0x8] sm:$0xf]
  %v2029 = vld [vmem:[%s7 + $0xc] sm:$0xf]
  %v2030 = vld [vmem:[%s7 + $0x10] sm:$0xf]
  %v2031 = vld [vmem:[%s7 + $0x14] sm:$0xf]
  %v2032 = vld [vmem:[%s7 + $0x18] sm:$0xf]
  %v2033 = vld [vmem:[%s7 + $0x1c] sm:$0xf]
  %v2034 = vld [vmem:[%s7 + $0x20] sm:$0xf]
  %v2035 = vld [vmem:[%s7 + $0x24] sm:$0xf]
  %v2036 = vld [vmem:[%s7 + $0x28] sm:$0xf]
  %v2037 = vld [vmem:[%s7 + $0x2c] sm:$0xf]
  %v2038 = vld [vmem:[%s7 + $0x30] sm:$0xf]
  %v2039 = vld [vmem:[%s7 + $0x34] sm:$0xf]
  %v2040 = vld [vmem:[%s7 + $0x38] sm:$0xf]
  %v2041 = vld [vmem:[%s7 + $0x3c] sm:$0xf]
  %v2058 = vunpack.c.l.b16 %v2026
  %v2059 = vunpack.c.l.b16 %v2027
  %v2060 = vunpack.c.l.b16 %v2028
  %v2061 = vunpack.c.l.b16 %v2029
  %v2062 = vunpack.c.l.b16 %v2030
  %v2063 = vunpack.c.l.b16 %v2031
  %v2064 = vunpack.c.l.b16 %v2032
  %v2065 = vunpack.c.l.b16 %v2033
  %v2066 = vunpack.c.l.b16 %v2034
  %v2067 = vunpack.c.l.b16 %v2035
  %v2068 = vunpack.c.l.b16 %v2036
  %v2069 = vunpack.c.l.b16 %v2037
  %v2070 = vunpack.c.l.b16 %v2038
  %v2071 = vunpack.c.l.b16 %v2039
  %v2072 = vunpack.c.l.b16 %v2040
  %v2073 = vunpack.c.l.b16 %v2041
  %v2074 = vpack.c.b16 %v2059, %v2058
  %v2075 = vpack.c.b16 %v2061, %v2060
  %v2076 = vpack.c.b16 %v2063, %v2062
  %v2077 = vpack.c.b16 %v2065, %v2064
  %v2078 = vpack.c.b16 %v2067, %v2066
  %v2079 = vpack.c.b16 %v2069, %v2068
  %v2080 = vpack.c.b16 %v2071, %v2070
  %v2081 = vpack.c.b16 %v2073, %v2072
  %2090 = vmatprep.subr.bf16.mxu0 0
  %2091 = vmatpush1.bf16.msra.mxu0 %v2081
  %2092 = vmatprep.subr.bf16.mxu0 0
  %2093 = vmatpush1.bf16.msra.mxu0 %v2080
  %2094 = vmatprep.subr.bf16.mxu0 0
  %2095 = vmatpush1.bf16.msra.mxu0 %v2079
  %2096 = vmatprep.subr.bf16.mxu0 0
  %2097 = vmatpush1.bf16.msra.mxu0 %v2078
  %2098 = vmatprep.subr.bf16.mxu0 0
  %2099 = vmatpush1.bf16.msra.mxu0 %v2077
  %2100 = vmatprep.subr.bf16.mxu0 0
  %2101 = vmatpush1.bf16.msra.mxu0 %v2076
  %2102 = vmatprep.subr.bf16.mxu0 0
  %2103 = vmatpush1.bf16.msra.mxu0 %v2075
  %2104 = vmatprep.subr.bf16.mxu0 0
  %2105 = vmatpush1.bf16.msra.mxu0 %v2074
  %2106 = vmatprep.subr.bf16.mxu0 0
  %2107 = vmatpush2.bf16.msra.mxu0 0
  %2108 = vmatprep.subr.bf16.mxu0 0
  %2109 = vmatpush2.bf16.msra.mxu0 0
  %2110 = vmatprep.subr.bf16.mxu0 0
  %2111 = vmatpush2.bf16.msra.mxu0 0
  %2112 = vmatprep.subr.bf16.mxu0 0
  %2113 = vmatpush2.bf16.msra.mxu0 0
  %2114 = vmatprep.subr.bf16.mxu0 0
  %2115 = vmatpush2.bf16.msra.mxu0 0
  %2116 = vmatprep.subr.bf16.mxu0 0
  %2117 = vmatpush2.bf16.msra.mxu0 0
  %2118 = vmatprep.subr.bf16.mxu0 0
  %2119 = vmatpush2.bf16.msra.mxu0 0
  %2120 = vmatprep.subr.bf16.mxu0 0
  %2121 = vmatpush2.bf16.msra.mxu0 0
  %2122 = vmatprep.mubr.bf16.mxu0 0
  %2123 = vmatmul.mubr.bf16.gmra.mxu0 %v2025
  %v2124 = vpop.f32.mrf.mxu0
  %v2125 = vadd.f32 0.0, %v2124
  %v2126 = vpop.f32.mrf.mxu0
  %v2127 = vpop.f32.mrf.mxu0
  %v2128 = vpop.f32.mrf.mxu0
  %2129 = vdwg.mxu0
  %v2130 = vmax.f32 %v2125, 0.0
  %v2131 = vpack.c.bf16 %v2130, %v2130
  %v2132 = vld [vmem:[%s8] sm:$0xf]
  %v2133 = vld [vmem:[%s8 + $0x4] sm:$0xf]
  %v2134 = vld [vmem:[%s8 + $0x8] sm:$0xf]
  %v2135 = vld [vmem:[%s8 + $0xc] sm:$0xf]
  %v2136 = vld [vmem:[%s8 + $0x10] sm:$0xf]
  %v2137 = vld [vmem:[%s8 + $0x14] sm:$0xf]
  %v2138 = vld [vmem:[%s8 + $0x18] sm:$0xf]
  %v2139 = vld [vmem:[%s8 + $0x1c] sm:$0xf]
  %v2140 = vld [vmem:[%s8 + $0x20] sm:$0xf]
  %v2141 = vld [vmem:[%s8 + $0x24] sm:$0xf]
  %v2142 = vld [vmem:[%s8 + $0x28] sm:$0xf]
  %v2143 = vld [vmem:[%s8 + $0x2c] sm:$0xf]
  %v2144 = vld [vmem:[%s8 + $0x30] sm:$0xf]
  %v2145 = vld [vmem:[%s8 + $0x34] sm:$0xf]
  %v2146 = vld [vmem:[%s8 + $0x38] sm:$0xf]
  %v2147 = vld [vmem:[%s8 + $0x3c] sm:$0xf]
  %v2164 = vunpack.c.l.b16 %v2132
  %v2165 = vunpack.c.l.b16 %v2133
  %v2166 = vunpack.c.l.b16 %v2134
  %v2167 = vunpack.c.l.b16 %v2135
  %v2168 = vunpack.c.l.b16 %v2136
  %v2169 = vunpack.c.l.b16 %v2137
  %v2170 = vunpack.c.l.b16 %v2138
  %v2171 = vunpack.c.l.b16 %v2139
  %v2172 = vunpack.c.l.b16 %v2140
  %v2173 = vunpack.c.l.b16 %v2141
  %v2174 = vunpack.c.l.b16 %v2142
  %v2175 = vunpack.c.l.b16 %v2143
  %v2176 = vunpack.c.l.b16 %v2144
  %v2177 = vunpack.c.l.b16 %v2145
  %v2178 = vunpack.c.l.b16 %v2146
  %v2179 = vunpack.c.l.b16 %v2147
  %v2180 = vpack.c.b16 %v2165, %v2164
  %v2181 = vpack.c.b16 %v2167, %v2166
  %v2182 = vpack.c.b16 %v2169, %v2168
  %v2183 = vpack.c.b16 %v2171, %v2170
  %v2184 = vpack.c.b16 %v2173, %v2172
  %v2185 = vpack.c.b16 %v2175, %v2174
  %v2186 = vpack.c.b16 %v2177, %v2176
  %v2187 = vpack.c.b16 %v2179, %v2178
  %2196 = vmatprep.subr.bf16.mxu0 0
  %2197 = vmatpush1.bf16.msra.mxu0 %v2187
  %2198 = vmatprep.subr.bf16.mxu0 0
  %2199 = vmatpush1.bf16.msra.mxu0 %v2186
  %2200 = vmatprep.subr.bf16.mxu0 0
  %2201 = vmatpush1.bf16.msra.mxu0 %v2185
  %2202 = vmatprep.subr.bf16.mxu0 0
  %2203 = vmatpush1.bf16.msra.mxu0 %v2184
  %2204 = vmatprep.subr.bf16.mxu0 0
  %2205 = vmatpush1.bf16.msra.mxu0 %v2183
  %2206 = vmatprep.subr.bf16.mxu0 0
  %2207 = vmatpush1.bf16.msra.mxu0 %v2182
  %2208 = vmatprep.subr.bf16.mxu0 0
  %2209 = vmatpush1.bf16.msra.mxu0 %v2181
  %2210 = vmatprep.subr.bf16.mxu0 0
  %2211 = vmatpush1.bf16.msra.mxu0 %v2180
  %2212 = vmatprep.subr.bf16.mxu0 0
  %2213 = vmatpush2.bf16.msra.mxu0 0
  %2214 = vmatprep.subr.bf16.mxu0 0
  %2215 = vmatpush2.bf16.msra.mxu0 0
  %2216 = vmatprep.subr.bf16.mxu0 0
  %2217 = vmatpush2.bf16.msra.mxu0 0
  %2218 = vmatprep.subr.bf16.mxu0 0
  %2219 = vmatpush2.bf16.msra.mxu0 0
  %2220 = vmatprep.subr.bf16.mxu0 0
  %2221 = vmatpush2.bf16.msra.mxu0 0
  %2222 = vmatprep.subr.bf16.mxu0 0
  %2223 = vmatpush2.bf16.msra.mxu0 0
  %2224 = vmatprep.subr.bf16.mxu0 0
  %2225 = vmatpush2.bf16.msra.mxu0 0
  %2226 = vmatprep.subr.bf16.mxu0 0
  %2227 = vmatpush2.bf16.msra.mxu0 0
  %2228 = vmatprep.mubr.bf16.mxu0 0
  %2229 = vmatmul.mubr.bf16.gmra.mxu0 %v2131
  %v2230 = vpop.f32.mrf.mxu0
  %v2231 = vadd.f32 0.0, %v2230
  %v2232 = vpop.f32.mrf.mxu0
  %v2233 = vpop.f32.mrf.mxu0
  %v2234 = vpop.f32.mrf.mxu0
  %2235 = vdwg.mxu0
  %2236 = vst [vmem:[%s9] sm:$0xff] %v2231
  // Predicated region
  $region38: #{t3_forward.1} parent=0 // pred_check
    _
  $region39: #{t3_forward.1} parent=0 // pred_check_branch
    %2238 = sbr.rel (0) target = $region41
  $region40: #{t3_forward.1} parent=0 // pred_region
    _
  $region41: #{t3_forward.1} parent=0 // pred_fallthru
    _
  // Predicated region
  $region42: #{t3_forward.1} parent=0 // pred_check
    _
  $region43: #{t3_forward.1} parent=0 // pred_check_branch
    %2240 = sbr.rel (0) target = $region45
  $region44: #{t3_forward.1} parent=0 // pred_region
    _
  $region45: #{t3_forward.1} parent=0 // pred_fallthru
    _

</llo_original>
